<compile_context>
chip_gen: v6e
topology: v6e:2x2x1
jax: 0.10.0
libtpu: 0.0.40
codegen_flags: <defaults>
</compile_context>

<pallas_src>
import functools

import jax
import jax.numpy as jnp
from jax.experimental import pallas as pl
from jax.experimental.pallas import tpu as pltpu


def _round_up(v, m):
    return (v + m - 1) // m * m


def _gnn_pool_kernel(a_ref, xwg_ref, bg_ref, p_ref, part_ref, ax_acc):
    """Grid = (row tiles of A_hat [parallel], contraction tiles [arbitrary]).

    Per row tile i: accumulate AXW = A_tile @ XWg over k in f32, then on the
    last k step compute H_tile = ReLU(AXW + bg) and the per-tile partial pooled
    representation P_tile @ H_tile, written to part_ref[i].
    """
    k = pl.program_id(1)
    nk = pl.num_programs(1)

    @pl.when(k == 0)
    def _():
        ax_acc[...] = jnp.zeros_like(ax_acc)

    ax_acc[...] += jnp.dot(a_ref[...], xwg_ref[...],
                           preferred_element_type=jnp.float32)

    @pl.when(k == nk - 1)
    def _():
        # GCN nonlinearity in f32; padded node rows give ReLU(bg), neutralized
        # by the zero padded columns of P.
        h = jnp.maximum(ax_acc[...] + bg_ref[...], 0.0)
        part_ref[0, :, :] = jnp.dot(p_ref[...], h.astype(p_ref.dtype),
                                    preferred_element_type=jnp.float32)


def _reduce_mlp_kernel(part_ref, w1_ref, b1_ref, w2_ref, b2_ref, out_ref,
                       rep_acc):
    """Grid = (row tiles,). Sum per-tile partial reps, then run out_mlp:
    Linear(C, 2C) -> ReLU -> Linear(2C, num_classes)."""
    i = pl.program_id(0)
    ni = pl.num_programs(0)

    @pl.when(i == 0)
    def _():
        rep_acc[...] = jnp.zeros_like(rep_acc)

    rep_acc[...] += part_ref[0, :, :]

    @pl.when(i == ni - 1)
    def _():
        cdt = w1_ref.dtype
        z = jnp.maximum(
            jnp.dot(rep_acc[...].astype(cdt), w1_ref[...],
                    preferred_element_type=jnp.float32) + b1_ref[...],
            0.0)
        out_ref[...] = (jnp.dot(z.astype(cdt), w2_ref[...],
                                preferred_element_type=jnp.float32)
                        + b2_ref[...])


def causal_nn_forward(a_hat, x, params, *, tile_m=None, tile_k=None,
                      compute_dtype=jnp.bfloat16):
    N, _ = x.shape
    G = params["P"].shape[0]
    C = params["Wg"].shape[1]
    C2 = params["W1"].shape[1]
    K = params["W2"].shape[1]

    # Pad the node dim only to a small multiple (256) and pick tiles that
    # divide it; lane dims of the small operands pad to 128.
    # TODO(synk): for awkward large N, mask the ragged last tile instead of
    #             padding (keeps big-tile DMA without the padded rows/cols).
    Np = _round_up(N, 256)
    Cp = _round_up(C, 128)
    C2p = _round_up(C2, 128)
    Kp = _round_up(K, 128)
    Gp = _round_up(G, 8)

    if tile_m is None:
        tile_m = 256
    if tile_k is None:
        tile_k = 512 if Np % 512 == 0 else 256
    tile_m = min(tile_m, Np)
    tile_k = min(tile_k, Np)
    assert Np % tile_m == 0 and Np % tile_k == 0

    def pad2(arr, rows, cols, dtype):
        out = jnp.zeros((rows, cols), dtype)
        return out.at[:arr.shape[0], :arr.shape[1]].set(arr.astype(dtype))

    # Hoisted X @ Wg (perf feedback): one f32 matmul in the wrapper, streamed
    # to the kernel as the bf16 contraction operand.
    xwg = jnp.dot(x.astype(jnp.float32), params["Wg"].astype(jnp.float32),
                  preferred_element_type=jnp.float32)
    xwg_p = pad2(xwg, Np, Cp, compute_dtype)

    a_p = pad2(a_hat, Np, Np, compute_dtype)
    p_p = pad2(params["P"], Gp, Np, compute_dtype)
    bg_p = pad2(params["bg"], 1, Cp, jnp.float32)
    w1_p = pad2(params["W1"], Cp, C2p, compute_dtype)
    b1_p = pad2(params["b1"], 1, C2p, jnp.float32)
    w2_p = pad2(params["W2"], C2p, Kp, compute_dtype)
    b2_p = pad2(params["b2"], 1, Kp, jnp.float32)

    ni = Np // tile_m
    nk = Np // tile_k

    # ---- kernel 1: GCN layer + per-row-tile partial mean-pool ----
    flops1 = 2 * Np * Np * Cp + 2 * Gp * Np * Cp
    bytes1 = (2 * Np * Np            # A (bf16)
              + 2 * ni * Np * Cp     # XWg re-streamed per row tile
              + 2 * Gp * Np          # P
              + 4 * Cp               # bg
              + 4 * ni * Gp * Cp)    # partial reps out (f32)

    partial = pl.pallas_call(
        _gnn_pool_kernel,
        out_shape=jax.ShapeDtypeStruct((ni, Gp, Cp), jnp.float32),
        grid_spec=pltpu.PrefetchScalarGridSpec(
            num_scalar_prefetch=0,
            grid=(ni, nk),
            in_specs=[
                pl.BlockSpec((tile_m, tile_k), lambda i, k: (i, k)),   # A_hat
                pl.BlockSpec((tile_k, Cp), lambda i, k: (k, 0)),       # X @ Wg
                pl.BlockSpec((1, Cp), lambda i, k: (0, 0)),            # bg
                pl.BlockSpec((Gp, tile_m), lambda i, k: (0, i)),       # P
            ],
            out_specs=pl.BlockSpec((1, Gp, Cp), lambda i, k: (i, 0, 0)),
            scratch_shapes=[pltpu.VMEM((tile_m, Cp), jnp.float32)]),
        compiler_params=pltpu.CompilerParams(
            dimension_semantics=("parallel", "arbitrary")),
        cost_estimate=pl.CostEstimate(flops=flops1, transcendentals=0,
                                      bytes_accessed=bytes1),
    )(a_p, xwg_p, bg_p, p_p)

    # ---- kernel 2: reduce partial reps + out_mlp ----
    flops2 = 2 * Gp * Cp * C2p + 2 * Gp * C2p * Kp
    bytes2 = (4 * ni * Gp * Cp + 2 * (Cp * C2p + C2p * Kp)
              + 4 * (C2p + Kp) + 4 * Gp * Kp)

    out_p = pl.pallas_call(
        _reduce_mlp_kernel,
        out_shape=jax.ShapeDtypeStruct((Gp, Kp), jnp.float32),
        grid_spec=pltpu.PrefetchScalarGridSpec(
            num_scalar_prefetch=0,
            grid=(ni,),
            in_specs=[
                pl.BlockSpec((1, Gp, Cp), lambda i: (i, 0, 0)),   # partial reps
                pl.BlockSpec((Cp, C2p), lambda i: (0, 0)),        # W1
                pl.BlockSpec((1, C2p), lambda i: (0, 0)),         # b1
                pl.BlockSpec((C2p, Kp), lambda i: (0, 0)),        # W2
                pl.BlockSpec((1, Kp), lambda i: (0, 0)),          # b2
            ],
            out_specs=pl.BlockSpec((Gp, Kp), lambda i: (0, 0)),
            scratch_shapes=[pltpu.VMEM((Gp, Cp), jnp.float32)]),
        compiler_params=pltpu.CompilerParams(
            dimension_semantics=("arbitrary",)),
        cost_estimate=pl.CostEstimate(flops=flops2, transcendentals=0,
                                      bytes_accessed=bytes2),
    )(partial, w1_p, b1_p, w2_p, b2_p)

    return out_p[:G, :K]


def reference_forward_f32(a_hat, x, params):
    ax = a_hat @ x
    h = jnp.maximum(ax @ params["Wg"] + params["bg"], 0.0)
    rep = params["P"] @ h
    z = jnp.maximum(rep @ params["W1"] + params["b1"], 0.0)
    return z @ params["W2"] + params["b2"]


def reference_forward_bf16(a_hat, x, params):
    """Same math as the kernels: XWg in f32, bf16 matmul operands elsewhere,
    f32 accumulation / bias / ReLU."""
    c = lambda t: t.astype(jnp.bfloat16)
    dot = functools.partial(jnp.dot, preferred_element_type=jnp.float32)
    xwg = jnp.dot(x.astype(jnp.float32), params["Wg"].astype(jnp.float32),
                  preferred_element_type=jnp.float32)
    h = jnp.maximum(dot(c(a_hat), c(xwg)) + params["bg"], 0.0)
    rep = dot(c(params["P"]), c(h))
    z = jnp.maximum(dot(c(rep), c(params["W1"])) + params["b1"], 0.0)
    return dot(c(z), c(params["W2"])) + params["b2"]


def build_inputs(key, N=1024, Fin=8, C=32, G=2, K=4):
    ks = jax.random.split(key, 8)

    # node features
    x = jax.random.normal(ks[0], (N, Fin), dtype=jnp.float32)

    # random undirected edges -> dense adjacency with self loops, sym-normalized
    probs = jax.random.uniform(ks[1], (N, N))
    adj = (probs + probs.T > 1.4).astype(jnp.float32)
    adj = jnp.minimum(adj + jnp.eye(N, dtype=jnp.float32), 1.0)
    deg = jnp.sum(adj, axis=1)
    d_inv_sqrt = 1.0 / jnp.sqrt(deg)
    a_hat = adj * d_inv_sqrt[:, None] * d_inv_sqrt[None, :]

    # batch assignment: first N//G nodes -> graph 0, etc.; mean-pool matrix P
    nodes_per_graph = N // G
    batch = jnp.repeat(jnp.arange(G), nodes_per_graph)
    P = (jnp.arange(G)[:, None] == batch[None, :]).astype(jnp.float32)
    P = P / jnp.sum(P, axis=1, keepdims=True)

    def glorot(k, shape):
        fan_in, fan_out = shape
        lim = jnp.sqrt(6.0 / (fan_in + fan_out))
        return jax.random.uniform(k, shape, jnp.float32, -lim, lim)

    params = {
        "Wg": glorot(ks[2], (Fin, C)),
        "bg": jnp.zeros((1, C), jnp.float32),
        "P": P,
        "W1": glorot(ks[3], (C, 2 * C)),
        "b1": jax.random.uniform(ks[4], (1, 2 * C), jnp.float32, -0.1, 0.1),
        "W2": glorot(ks[5], (2 * C, K)),
        "b2": jax.random.uniform(ks[6], (1, K), jnp.float32, -0.1, 0.1),
    }
    return a_hat, x, params


if __name__ == "__main__":
    key = jax.random.PRNGKey(0)
    # N=1024 exercises a (4 row-tile x 2 contraction-tile) grid with the
    # enlarged (256 x 512) tiles, plus the 4-step reduce+MLP kernel.
    a_hat, x, params = build_inputs(key, N=1024, Fin=8, C=32, G=2, K=4)

    pred = jax.block_until_ready(causal_nn_forward(a_hat, x, params))

    ref_bf16 = reference_forward_bf16(a_hat, x, params)   # what the kernels compute
    ref_f32 = reference_forward_f32(a_hat, x, params)     # original f32 semantics
    assert pred.shape == ref_f32.shape == (2, 4)
    assert jnp.allclose(pred, ref_bf16, atol=2e-3, rtol=2e-3), (
        f"bf16-matched ref max abs err {jnp.max(jnp.abs(pred - ref_bf16))}")
    assert jnp.allclose(pred, ref_f32, atol=5e-2, rtol=5e-2), (
        f"f32 ref max abs err {jnp.max(jnp.abs(pred - ref_f32))}")

    print("KERNEL_OK")
</pallas_src>

<mosaic_0001>
module attributes {stable_mosaic.version = 11 : i64} {
  func.func @_gnn_pool_kernel(%arg0: i32, %arg1: i32, %arg2: memref<256x512xbf16, #tpu.memory_space<vmem>>, %arg3: memref<512x128xbf16, #tpu.memory_space<vmem>>, %arg4: memref<1x128xf32, #tpu.memory_space<vmem>>, %arg5: memref<8x256xbf16, #tpu.memory_space<vmem>>, %arg6: memref<1x8x128xf32, #tpu.memory_space<vmem>>, %arg7: memref<256x128xf32, #tpu.memory_space<vmem>>) attributes {dimension_semantics = [#tpu.dimension_semantics<parallel>, #tpu.dimension_semantics<arbitrary>], iteration_bounds = array<i64: 4, 2>, scalar_prefetch = 0 : i64, scratch_operands = 1 : i64, tpu.core_type = #tpu.core_type<tc>, window_params = [{transform_indices = @transform_0, window_bounds = array<i64: 256, 512>}, {transform_indices = @transform_1, window_bounds = array<i64: 512, 128>}, {pipeline_mode = #tpu.pipeline_mode<synchronous>, transform_indices = @transform_2, window_bounds = array<i64: 1, 128>}, {transform_indices = @transform_3, window_bounds = array<i64: 8, 256>}, {transform_indices = @transform_4, window_bounds = array<i64: 1, 8, 128>}]} {
    %c0_i32 = arith.constant 0 : i32
    %0 = arith.cmpi eq, %arg1, %c0_i32 : i32
    %1 = arith.extui %0 : i1 to i32
    %c0_i32_0 = arith.constant 0 : i32
    %2 = arith.cmpi ne, %1, %c0_i32_0 : i32
    scf.if %2 {
      %cst_9 = arith.constant 0.000000e+00 : f32
      %12 = vector.broadcast %cst_9 : f32 to vector<256x128xf32>
      %c0_10 = arith.constant 0 : index
      %c0_11 = arith.constant 0 : index
      %13 = vector.load %arg7[%c0_10, %c0_11] : memref<256x128xf32, #tpu.memory_space<vmem>>, vector<256x128xf32>
      tpu.vector_store %arg7[%c0_10, %c0_11], %12 {strides = array<i32>} : memref<256x128xf32, #tpu.memory_space<vmem>>, vector<256x128xf32>,
    } else {
    }
    %c0 = arith.constant 0 : index
    %c0_1 = arith.constant 0 : index
    %3 = vector.load %arg7[%c0, %c0_1] : memref<256x128xf32, #tpu.memory_space<vmem>>, vector<256x128xf32>
    %c0_2 = arith.constant 0 : index
    %c0_3 = arith.constant 0 : index
    %4 = vector.load %arg2[%c0_2, %c0_3] : memref<256x512xbf16, #tpu.memory_space<vmem>>, vector<256x512xbf16>
    %c0_4 = arith.constant 0 : index
    %c0_5 = arith.constant 0 : index
    %5 = vector.load %arg3[%c0_4, %c0_5] : memref<512x128xbf16, #tpu.memory_space<vmem>>, vector<512x128xbf16>
    %cst = arith.constant dense<0.000000e+00> : vector<256x128xf32>
    %6 = tpu.matmul %4, %5, %cst {dimension_numbers = #tpu.dot_dimension_numbers<[1], [0], [0], [1], [0, 0, 1, 1], [], []>} : vector<256x512xbf16>, vector<512x128xbf16>, vector<256x128xf32> -> vector<256x128xf32>
    %7 = arith.addf %3, %6 : vector<256x128xf32>
    %c0_6 = arith.constant 0 : index
    %c0_7 = arith.constant 0 : index
    %8 = vector.load %arg7[%c0_6, %c0_7] : memref<256x128xf32, #tpu.memory_space<vmem>>, vector<256x128xf32>
    tpu.vector_store %arg7[%c0_6, %c0_7], %7 {strides = array<i32>} : memref<256x128xf32, #tpu.memory_space<vmem>>, vector<256x128xf32>,
    %c1_i32 = arith.constant 1 : i32
    %9 = arith.cmpi eq, %arg1, %c1_i32 : i32
    %10 = arith.extui %9 : i1 to i32
    %c0_i32_8 = arith.constant 0 : i32
    %11 = arith.cmpi ne, %10, %c0_i32_8 : i32
    scf.if %11 {
      %c0_9 = arith.constant 0 : index
      %c0_10 = arith.constant 0 : index
      %12 = vector.load %arg7[%c0_9, %c0_10] : memref<256x128xf32, #tpu.memory_space<vmem>>, vector<256x128xf32>
      %c0_11 = arith.constant 0 : index
      %c0_12 = arith.constant 0 : index
      %13 = vector.load %arg4[%c0_11, %c0_12] : memref<1x128xf32, #tpu.memory_space<vmem>>, vector<1x128xf32>
      %14 = vector.broadcast %13 : vector<1x128xf32> to vector<256x128xf32>
      %15 = arith.addf %12, %14 : vector<256x128xf32>
      %cst_13 = arith.constant 0.000000e+00 : f32
      %16 = vector.broadcast %cst_13 : f32 to vector<256x128xf32>
      %17 = arith.maximumf %15, %16 : vector<256x128xf32>
      %c0_14 = arith.constant 0 : index
      %c0_15 = arith.constant 0 : index
      %18 = vector.load %arg5[%c0_14, %c0_15] : memref<8x256xbf16, #tpu.memory_space<vmem>>, vector<8x256xbf16>
      %19 = arith.truncf %17 : vector<256x128xf32> to vector<256x128xbf16>
      %cst_16 = arith.constant dense<0.000000e+00> : vector<8x128xf32>
      %20 = tpu.matmul %18, %19, %cst_16 {dimension_numbers = #tpu.dot_dimension_numbers<[1], [0], [0], [1], [0, 0, 1, 1], [], []>} : vector<8x256xbf16>, vector<256x128xbf16>, vector<8x128xf32> -> vector<8x128xf32>
      %c0_17 = arith.constant 0 : index
      %c0_18 = arith.constant 0 : index
      %c0_19 = arith.constant 0 : index
      %21 = vector.load %arg6[%c0_17, %c0_18, %c0_19] : memref<1x8x128xf32, #tpu.memory_space<vmem>>, vector<1x8x128xf32>
      %22 = vector.shape_cast %21 : vector<1x8x128xf32> to vector<8x128xf32>
      %23 = vector.shape_cast %20 : vector<8x128xf32> to vector<1x8x128xf32>
      tpu.vector_store %arg6[%c0_17, %c0_18, %c0_19], %23 {strides = array<i32>} : memref<1x8x128xf32, #tpu.memory_space<vmem>>, vector<1x8x128xf32>,
    } else {
    }
    return
  }
  func.func @transform_0(%arg0: i32, %arg1: i32) -> (i32, i32) {
    %c0_i32 = arith.constant 0 : i32
    return %arg0, %arg1 : i32, i32
  }
  func.func @transform_1(%arg0: i32, %arg1: i32) -> (i32, i32) {
    %c0_i32 = arith.constant 0 : i32
    %c0_i32_0 = arith.constant 0 : i32
    return %arg1, %c0_i32 : i32, i32
  }
  func.func @transform_2(%arg0: i32, %arg1: i32) -> (i32, i32) {
    %c0_i32 = arith.constant 0 : i32
    %c0_i32_0 = arith.constant 0 : i32
    %c0_i32_1 = arith.constant 0 : i32
    return %c0_i32, %c0_i32_0 : i32, i32
  }
  func.func @transform_3(%arg0: i32, %arg1: i32) -> (i32, i32) {
    %c0_i32 = arith.constant 0 : i32
    %c0_i32_0 = arith.constant 0 : i32
    return %c0_i32, %arg0 : i32, i32
  }
  func.func @transform_4(%arg0: i32, %arg1: i32) -> (i32, i32, i32) {
    %c0_i32 = arith.constant 0 : i32
    %c0_i32_0 = arith.constant 0 : i32
    %c0_i32_1 = arith.constant 0 : i32
    return %arg0, %c0_i32, %c0_i32_0 : i32, i32, i32
  }
}

</mosaic_0001>

<llo_original>
// kernel: tpu_custom_call.1
$region0: #{tpu_custom_call.1}
  #allocation0 [shape = 'u32[]', space=smem, size = 0x4, offset = 0x4, fixed_abs, tag = 'smem constant byte address 0x4 - core index']
  #allocation1 [shape = 'u32[144,128]{1,0:T(1,128)}', space=vmem, size = 0x12000, scoped, tag = 'internal scratch']
  #allocation2 [shape = 'f32[256,128]{1,0:T(8,128)}', space=vmem, size = 0x20000, scoped, tag = 'scratch operand']
  %s0 = inlined_call_operand.hbm [shape: bf16[1024,1024], index: 0, kind: input, shape index: {}]
  %s1 = inlined_call_operand.hbm [shape: bf16[1024,128], index: 1, kind: input, shape index: {}]
  %s2 = inlined_call_operand.hbm [shape: f32[1,128], index: 2, kind: input, shape index: {}]
  %s3 = inlined_call_operand.hbm [shape: bf16[8,1024], index: 3, kind: input, shape index: {}]
  %s4 = inlined_call_operand.hbm [shape: f32[4,8,128], index: 4, kind: output, shape index: {}]
  %s5 = sld [smem:[#allocation0]]
  $region73: #{tpu_custom_call.1} parent=0
    _
  %s7 = ssub.s32 1, %s5
  %s8 = scalar_select 0, %s7, %s5
  $region1: #{tpu_custom_call.1} parent=0
    #allocation3 [shape = 'u8[524288]{0}', space=vmem, size = 0x80000, scoped, tag = 'input window, operand 0']
    #allocation4 [shape = 's32[2]{0}', space=sflag, size = 0x8, scoped, tag = 'scoped memory for tpu_custom_call.1']
    #allocation5 [shape = 's32[2]{0}', space=sflag, size = 0x8, scoped, tag = 'scoped memory for tpu_custom_call.1']
    #allocation6 [shape = 'u8[262144]{0}', space=vmem, size = 0x40000, scoped, tag = 'input window, operand 1']
    #allocation7 [shape = 's32[2]{0}', space=sflag, size = 0x8, scoped, tag = 'scoped memory for tpu_custom_call.1']
    #allocation8 [shape = 'u8[512]{0}', space=vmem, size = 0x400, scoped, tag = 'input window, operand 2, single buffered']
    #allocation9 [shape = 'u8[8192]{0}', space=vmem, size = 0x2000, scoped, tag = 'input window, operand 3']
    #allocation10 [shape = 's32[2]{0}', space=sflag, size = 0x8, scoped, tag = 'scoped memory for tpu_custom_call.1']
    #allocation11 [shape = 'u8[8192]{0}', space=vmem, size = 0x2000, scoped, tag = 'output window, operand 0']
    %9 = vsyncpa [#allocation4], 0
    %s10 = scalar_lea.sflag [#allocation4], 1
    %11 = vsyncpa %s10, 0
    %12 = vsyncpa [#allocation7], 0
    %s13 = scalar_lea.sflag [#allocation7], 1
    %14 = vsyncpa %s13, 0
    %15 = vsyncpa [#allocation10], 0
    %s16 = scalar_lea.sflag [#allocation10], 1
    %17 = vsyncpa %s16, 0
    %18 = vsyncpa [#allocation5], 0
    %s19 = scalar_lea.sflag [#allocation5], 1
    %20 = vsyncpa %s19, 0
    loop: start=0, step=1, limit=10
    $region2: #{tpu_custom_call.1} parent=1 // loop_pre_header
      _
    $region3: #{tpu_custom_call.1} parent=1 // loop_header
      %s22 = sphi 0, %s26
      %p23 = scmp.ge.s32.totalorder %s22, 10
      %s29 = sphi 0, %s41
      %s30 = sphi 0, %s37
      %s31 = sphi 0, %s29
      %s32 = sphi 0, %s30
      %s33 = sphi 0, %s31
      %s34 = sphi 0, %s32
      %s46 = sphi 0, %s48
      %s49 = sphi 0, %s46
      %s50 = sphi 0, %s49
      %s66 = sphi 0, %s50
      %s72 = sphi 0, %s74
      %s75 = sphi 0, %s72
      %s76 = sphi 0, %s75
      %s92 = sphi 0, %s76
      %s96 = sphi 0, %s96
      %s98 = sphi 0, %s96
      %s99 = sphi 0, %s98
      %s113 = sphi 0, %s99
      %s119 = sphi 0, %s121
      %s122 = sphi 0, %s119
      %s123 = sphi 0, %s122
      %s139 = sphi 0, %s123
      %s145 = sphi 0, %s147
      %s148 = sphi 0, %s145
      %s149 = sphi 0, %s148
      %s165 = sphi 0, %s149
    $region4: #{tpu_custom_call.1} parent=1 // loop_header_branch
      %25 = sbr.rel (%p23) target = $region8
    $region5: #{tpu_custom_call.1} parent=1 // loop_body
      %s27 = ssub.s32 %s22, 1
      %s28 = ssub.s32 %s22, 2
      %s35 = sadd.s32 1, %s30
      %p36 = scmp.ge.s32.totalorder %s35, 2
      %s37 = scalar_select %p36, 0, %s35
      %s38 = sadd.s32 1, %s29
      %s39 = scalar_select %p36, %s38, %s29
      %p40 = scmp.ge.s32.totalorder %s39, 4
      %s41 = scalar_select %p40, 0, %s39
      %s42 = ssub.s32 %s29, %s41
      %s43 = ssub.s32 %s30, %s37
      %s44 = sor.u32 %s42, %s43
      %p45 = scmp.eq.s32.totalorder %s44, 0
      %s47 = sadd.s32 %s46, 1
      %s48 = scalar_select %p45, %s46, %s47
      %p51 = pneg %p45
      %p52 = scmp.eq.s32.totalorder %s22, 7
      %p53 = por %p51, %p52
      %p54 = scmp.ne.s32.totalorder %s46, %s49
      %p55 = scmp.eq.s32.totalorder %s22, 0
      %p56 = por %p54, %p55
      %p57 = scmp.ne.s32.totalorder %s46, %s49
      %p58 = scmp.eq.s32.totalorder %s27, 7
      %p59 = por %p57, %p58
      %p60 = scmp.ne.s32.totalorder %s49, %s50
      %p61 = scmp.eq.s32.totalorder %s27, 0
      %p62 = por %p60, %p61
      %p63 = scmp.ne.s32.totalorder %s49, %s50
      %p64 = scmp.eq.s32.totalorder %s28, 7
      %p65 = por %p63, %p64
      %p67 = scmp.ne.s32.totalorder %s50, %s66
      %p68 = scmp.eq.s32.totalorder %s28, 0
      %p69 = por %p67, %p68
      %s70 = ssub.s32 %s30, %s37
      %p71 = scmp.eq.s32.totalorder %s70, 0
      %s73 = sadd.s32 %s72, 1
      %s74 = scalar_select %p71, %s72, %s73
      %p77 = pneg %p71
      %p78 = scmp.eq.s32.totalorder %s22, 7
      %p79 = por %p77, %p78
      %p80 = scmp.ne.s32.totalorder %s72, %s75
      %p81 = scmp.eq.s32.totalorder %s22, 0
      %p82 = por %p80, %p81
      %p83 = scmp.ne.s32.totalorder %s72, %s75
      %p84 = scmp.eq.s32.totalorder %s27, 7
      %p85 = por %p83, %p84
      %p86 = scmp.ne.s32.totalorder %s75, %s76
      %p87 = scmp.eq.s32.totalorder %s27, 0
      %p88 = por %p86, %p87
      %p89 = scmp.ne.s32.totalorder %s75, %s76
      %p90 = scmp.eq.s32.totalorder %s28, 7
      %p91 = por %p89, %p90
      %p93 = scmp.ne.s32.totalorder %s76, %s92
      %p94 = scmp.eq.s32.totalorder %s28, 0
      %p95 = por %p93, %p94
      %s97 = sadd.s32 %s96, 1
      %p100 = scmp.eq.s32.totalorder %s22, 7
      %p101 = scmp.ne.s32.totalorder %s96, %s98
      %p102 = scmp.eq.s32.totalorder %s22, 0
      %p103 = por %p101, %p102
      %p104 = scmp.ne.s32.totalorder %s96, %s98
      %p105 = scmp.eq.s32.totalorder %s27, 7
      %p106 = por %p104, %p105
      %p107 = scmp.ne.s32.totalorder %s98, %s99
      %p108 = scmp.eq.s32.totalorder %s27, 0
      %p109 = por %p107, %p108
      %p110 = scmp.ne.s32.totalorder %s98, %s99
      %p111 = scmp.eq.s32.totalorder %s28, 7
      %p112 = por %p110, %p111
      %p114 = scmp.ne.s32.totalorder %s99, %s113
      %p115 = scmp.eq.s32.totalorder %s28, 0
      %p116 = por %p114, %p115
      %s117 = ssub.s32 %s29, %s41
      %p118 = scmp.eq.s32.totalorder %s117, 0
      %s120 = sadd.s32 %s119, 1
      %s121 = scalar_select %p118, %s119, %s120
      %p124 = pneg %p118
      %p125 = scmp.eq.s32.totalorder %s22, 7
      %p126 = por %p124, %p125
      %p127 = scmp.ne.s32.totalorder %s119, %s122
      %p128 = scmp.eq.s32.totalorder %s22, 0
      %p129 = por %p127, %p128
      %p130 = scmp.ne.s32.totalorder %s119, %s122
      %p131 = scmp.eq.s32.totalorder %s27, 7
      %p132 = por %p130, %p131
      %p133 = scmp.ne.s32.totalorder %s122, %s123
      %p134 = scmp.eq.s32.totalorder %s27, 0
      %p135 = por %p133, %p134
      %p136 = scmp.ne.s32.totalorder %s122, %s123
      %p137 = scmp.eq.s32.totalorder %s28, 7
      %p138 = por %p136, %p137
      %p140 = scmp.ne.s32.totalorder %s123, %s139
      %p141 = scmp.eq.s32.totalorder %s28, 0
      %p142 = por %p140, %p141
      %s143 = ssub.s32 %s29, %s41
      %p144 = scmp.eq.s32.totalorder %s143, 0
      %s146 = sadd.s32 %s145, 1
      %s147 = scalar_select %p144, %s145, %s146
      %p150 = pneg %p144
      %p151 = scmp.eq.s32.totalorder %s22, 7
      %p152 = por %p150, %p151
      %p153 = scmp.ne.s32.totalorder %s145, %s148
      %p154 = scmp.eq.s32.totalorder %s22, 0
      %p155 = por %p153, %p154
      %p156 = scmp.ne.s32.totalorder %s145, %s148
      %p157 = scmp.eq.s32.totalorder %s27, 7
      %p158 = por %p156, %p157
      %p159 = scmp.ne.s32.totalorder %s148, %s149
      %p160 = scmp.eq.s32.totalorder %s27, 0
      %p161 = por %p159, %p160
      %p162 = scmp.ne.s32.totalorder %s148, %s149
      %p163 = scmp.eq.s32.totalorder %s28, 7
      %p164 = por %p162, %p163
      %p166 = scmp.ne.s32.totalorder %s149, %s165
      %p167 = scmp.eq.s32.totalorder %s28, 0
      %p168 = por %p166, %p167
      %p169 = scmp.le.s32.totalorder 1, %s22
      %p170 = scmp.lt.s32.totalorder %s22, 9
      %p171 = pnand %p169, %p170
      %p172 = pneg %p171
      // Predicated region
      $region9: #{tpu_custom_call.1} parent=5 // pred_check
        _
      $region10: #{tpu_custom_call.1} parent=5 // pred_check_branch
        %174 = sbr.rel (%p171) target = $region12
      $region11: #{tpu_custom_call.1} parent=5 // pred_region
        %s175 = ssub.s32 %s22, 1
        // Predicated region
        $region13: #{tpu_custom_call.1} parent=11 // pred_check
          %p176 = pneg %p109
        $region14: #{tpu_custom_call.1} parent=11 // pred_check_branch
          %178 = sbr.rel (%p176) target = $region16
        $region15: #{tpu_custom_call.1} parent=11 // pred_region
          %s180 = ssub.s32 16, 16
          %181 = vsyncadd [#allocation7], %s180
          %s183 = sshll.u32 [#allocation8], 4
          %s184 = int_to_ptr.vmem [resolvable:$true] %s183
          %186 = dma.hbm_to_vmem [thread:$0]  %s2, 16, %s184, [#allocation7]
        $region16: #{tpu_custom_call.1} parent=11 // pred_fallthru
          _
      $region12: #{tpu_custom_call.1} parent=5 // pred_fallthru
        _
      %p187 = scmp.lt.s32.totalorder %s22, 8
      // Predicated region
      $region17: #{tpu_custom_call.1} parent=5 // pred_check
        %p188 = pneg %p187
      $region18: #{tpu_custom_call.1} parent=5 // pred_check_branch
        %190 = sbr.rel (%p188) target = $region20
      $region19: #{tpu_custom_call.1} parent=5 // pred_region
        // Predicated region
        $region21: #{tpu_custom_call.1} parent=19 // pred_check
          %p191 = pneg %p56
        $region22: #{tpu_custom_call.1} parent=19 // pred_check_branch
          %193 = sbr.rel (%p191) target = $region24
        $region23: #{tpu_custom_call.1} parent=19 // pred_region
          %s194 = sand.u32 %s46, 1
          %s195 = scalar_lea.sflag [#allocation4], %s194
          %s196 = sand.u32 %s46, 1
          %s197 = smul.addr %s196, 512
          %s198 = scalar_lea.vmem [#allocation3], %s197
          %s199 = smul.u32 32, %s29
          %s200 = smul.u32 4, %s30
          %s202 = ssub.s32 8192, 8192
          %203 = vsyncadd %s195, %s202
          %s204 = smul.addr %s199, 8
          %s205 = sadd.s32 %s200, %s204
          %s206 = smul.addr %s205, 64
          %s207 = scalar_lea.hbm %s0, %s206
          %s208 = sshll.u32 %s198, 4
          %s209 = int_to_ptr.vmem [resolvable:$true] %s208
          %214 = dma.hbm_to_vmem [thread:$0]  %s207, 8192, %s209, %s195, 512, 256, 16
        $region24: #{tpu_custom_call.1} parent=19 // pred_fallthru
          _
        // Predicated region
        $region25: #{tpu_custom_call.1} parent=19 // pred_check
          %p215 = pneg %p82
        $region26: #{tpu_custom_call.1} parent=19 // pred_check_branch
          %217 = sbr.rel (%p215) target = $region28
        $region27: #{tpu_custom_call.1} parent=19 // pred_region
          %s218 = sand.u32 %s22, 1
          %s219 = scalar_lea.sflag [#allocation7], %s218
          %s220 = sand.u32 %s72, 1
          %s221 = smul.addr %s220, 256
          %s222 = scalar_lea.vmem [#allocation6], %s221
          %s223 = smul.u32 64, %s30
          %s225 = ssub.s32 4096, 4096
          %226 = vsyncadd %s219, %s225
          %s227 = smul.addr %s223, 64
          %s228 = scalar_lea.hbm %s1, %s227
          %s229 = sshll.u32 %s222, 4
          %s230 = int_to_ptr.vmem [resolvable:$true] %s229
          %235 = dma.hbm_to_vmem [thread:$0]  %s228, 4096, %s230, %s219, 64, 64, 4
        $region28: #{tpu_custom_call.1} parent=19 // pred_fallthru
          _
        // Predicated region
        $region29: #{tpu_custom_call.1} parent=19 // pred_check
          %p236 = pneg %p129
        $region30: #{tpu_custom_call.1} parent=19 // pred_check_branch
          %238 = sbr.rel (%p236) target = $region32
        $region31: #{tpu_custom_call.1} parent=19 // pred_region
          %s239 = sand.u32 %s119, 1
          %s240 = scalar_lea.sflag [#allocation10], %s239
          %s241 = sand.u32 %s119, 1
          %s242 = smul.addr %s241, 8
          %s243 = scalar_lea.vmem [#allocation9], %s242
          %s244 = smul.u32 2, %s29
          %s246 = ssub.s32 128, 128
          %247 = vsyncadd %s240, %s246
          %s248 = smul.addr %s244, 64
          %s249 = scalar_lea.hbm %s3, %s248
          %s251 = sshll.u32 %s243, 4
          %s252 = int_to_ptr.vmem [resolvable:$true] %s251
          %254 = dma.hbm_to_vmem [thread:$0]  %s249, 128, %s252, %s240
        $region32: #{tpu_custom_call.1} parent=19 // pred_fallthru
          _
      $region20: #{tpu_custom_call.1} parent=5 // pred_fallthru
        _
      %p255 = scmp.le.s32.totalorder 1, %s22
      %p256 = scmp.lt.s32.totalorder %s22, 9
      %p257 = pnand %p255, %p256
      %p258 = pneg %p257
      // Predicated region
      $region33: #{tpu_custom_call.1} parent=5 // pred_check
        _
      $region34: #{tpu_custom_call.1} parent=5 // pred_check_branch
        %260 = sbr.rel (%p257) target = $region36
      $region35: #{tpu_custom_call.1} parent=5 // pred_region
        %s261 = ssub.s32 %s22, 1
        %s262 = sand.u32 %s49, 1
        %s263 = scalar_lea.sflag [#allocation4], %s262
        %s264 = sand.u32 %s49, 1
        %s265 = smul.addr %s264, 512
        %s266 = scalar_lea.vmem [#allocation3], %s265
        // Predicated region
        $region37: #{tpu_custom_call.1} parent=35 // pred_check
          %p267 = pneg %p62
        $region38: #{tpu_custom_call.1} parent=35 // pred_check_branch
          %269 = sbr.rel (%p267) target = $region40
        $region39: #{tpu_custom_call.1} parent=35 // pred_region
          %270 = dma.done %s263, 8192
        $region40: #{tpu_custom_call.1} parent=35 // pred_fallthru
          _
        %s271 = sand.u32 %s27, 1
        %s272 = scalar_lea.sflag [#allocation7], %s271
        %s273 = sand.u32 %s75, 1
        %s274 = smul.addr %s273, 256
        %s275 = scalar_lea.vmem [#allocation6], %s274
        // Predicated region
        $region41: #{tpu_custom_call.1} parent=35 // pred_check
          %p276 = pneg %p88
        $region42: #{tpu_custom_call.1} parent=35 // pred_check_branch
          %278 = sbr.rel (%p276) target = $region44
        $region43: #{tpu_custom_call.1} parent=35 // pred_region
          %279 = dma.done %s272, 4096
        $region44: #{tpu_custom_call.1} parent=35 // pred_fallthru
          _
        // Predicated region
        $region45: #{tpu_custom_call.1} parent=35 // pred_check
          %p280 = pneg %p109
        $region46: #{tpu_custom_call.1} parent=35 // pred_check_branch
          %282 = sbr.rel (%p280) target = $region48
        $region47: #{tpu_custom_call.1} parent=35 // pred_region
          %283 = dma.done [#allocation7], 16
        $region48: #{tpu_custom_call.1} parent=35 // pred_fallthru
          _
        %s284 = sand.u32 %s122, 1
        %s285 = scalar_lea.sflag [#allocation10], %s284
        %s286 = sand.u32 %s122, 1
        %s287 = smul.addr %s286, 8
        %s288 = scalar_lea.vmem [#allocation9], %s287
        // Predicated region
        $region49: #{tpu_custom_call.1} parent=35 // pred_check
          %p289 = pneg %p135
        $region50: #{tpu_custom_call.1} parent=35 // pred_check_branch
          %291 = sbr.rel (%p289) target = $region52
        $region51: #{tpu_custom_call.1} parent=35 // pred_region
          %292 = dma.done %s285, 128
        $region52: #{tpu_custom_call.1} parent=35 // pred_fallthru
          _
        %s293 = sand.u32 %s49, 1
        %s294 = scalar_lea.sflag [#allocation4], %s293
        %s295 = sand.u32 %s49, 1
        %s296 = smul.addr %s295, 512
        %s297 = scalar_lea.vmem [#allocation3], %s296
        %p298 = pneg %p62
        %p299 = pneg %p59
        %s300 = sand.u32 %s27, 1
        %s301 = scalar_lea.sflag [#allocation7], %s300
        %s302 = sand.u32 %s75, 1
        %s303 = smul.addr %s302, 256
        %s304 = scalar_lea.vmem [#allocation6], %s303
        %p305 = pneg %p88
        %p306 = pneg %p85
        %p307 = pneg %p109
        %p308 = pneg %p106
        %s309 = sand.u32 %s122, 1
        %s310 = scalar_lea.sflag [#allocation10], %s309
        %s311 = sand.u32 %s122, 1
        %s312 = smul.addr %s311, 8
        %s313 = scalar_lea.vmem [#allocation9], %s312
        %p314 = pneg %p135
        %p315 = pneg %p132
        %p316 = pneg %p161
        %p317 = pneg %p158
        %s318 = sand.u32 %s148, 1
        %s319 = scalar_lea.sflag [#allocation5], %s318
        %s320 = sand.u32 %s148, 1
        %s321 = smul.addr %s320, 8
        %s322 = scalar_lea.vmem [#allocation11], %s321
        %s323 = smul.u32 32, %s31
        %s324 = smul.u32 4, %s32
        %s325 = smul.u32 64, %s32
        %s326 = smul.u32 2, %s31
        %p328 = scmp.eq.s32.totalorder %s32, 0
        // Predicated region
        $region53: #{tpu_custom_call.1} parent=35 // pred_check
          %p329 = pneg %p328
        $region54: #{tpu_custom_call.1} parent=35 // pred_check_branch
          %331 = sbr.rel (%p329) target = $region56
        $region55: #{tpu_custom_call.1} parent=35 // pred_region
          %332 = vst [vmem:[#allocation2] sm:$0xff] 0.0
          %333 = vst [vmem:[#allocation2 + $0x8] sm:$0xff] 0.0
          %334 = vst [vmem:[#allocation2 + $0x10] sm:$0xff] 0.0
          %335 = vst [vmem:[#allocation2 + $0x18] sm:$0xff] 0.0
          %336 = vst [vmem:[#allocation2 + $0x20] sm:$0xff] 0.0
          %337 = vst [vmem:[#allocation2 + $0x28] sm:$0xff] 0.0
          %338 = vst [vmem:[#allocation2 + $0x30] sm:$0xff] 0.0
          %339 = vst [vmem:[#allocation2 + $0x38] sm:$0xff] 0.0
          %340 = vst [vmem:[#allocation2 + $0x40] sm:$0xff] 0.0
          %341 = vst [vmem:[#allocation2 + $0x48] sm:$0xff] 0.0
          %342 = vst [vmem:[#allocation2 + $0x50] sm:$0xff] 0.0
          %343 = vst [vmem:[#allocation2 + $0x58] sm:$0xff] 0.0
          %344 = vst [vmem:[#allocation2 + $0x60] sm:$0xff] 0.0
          %345 = vst [vmem:[#allocation2 + $0x68] sm:$0xff] 0.0
          %346 = vst [vmem:[#allocation2 + $0x70] sm:$0xff] 0.0
          %347 = vst [vmem:[#allocation2 + $0x78] sm:$0xff] 0.0
          %348 = vst [vmem:[#allocation2 + $0x80] sm:$0xff] 0.0
          %349 = vst [vmem:[#allocation2 + $0x88] sm:$0xff] 0.0
          %350 = vst [vmem:[#allocation2 + $0x90] sm:$0xff] 0.0
          %351 = vst [vmem:[#allocation2 + $0x98] sm:$0xff] 0.0
          %352 = vst [vmem:[#allocation2 + $0xa0] sm:$0xff] 0.0
          %353 = vst [vmem:[#allocation2 + $0xa8] sm:$0xff] 0.0
          %354 = vst [vmem:[#allocation2 + $0xb0] sm:$0xff] 0.0
          %355 = vst [vmem:[#allocation2 + $0xb8] sm:$0xff] 0.0
          %356 = vst [vmem:[#allocation2 + $0xc0] sm:$0xff] 0.0
          %357 = vst [vmem:[#allocation2 + $0xc8] sm:$0xff] 0.0
          %358 = vst [vmem:[#allocation2 + $0xd0] sm:$0xff] 0.0
          %359 = vst [vmem:[#allocation2 + $0xd8] sm:$0xff] 0.0
          %360 = vst [vmem:[#allocation2 + $0xe0] sm:$0xff] 0.0
          %361 = vst [vmem:[#allocation2 + $0xe8] sm:$0xff] 0.0
          %362 = vst [vmem:[#allocation2 + $0xf0] sm:$0xff] 0.0
          %363 = vst [vmem:[#allocation2 + $0xf8] sm:$0xff] 0.0
        $region56: #{tpu_custom_call.1} parent=35 // pred_fallthru
          _
        %v364 = vld [vmem:[#allocation2] sm:$0xff]
        %v365 = vld [vmem:[#allocation2 + $0x8] sm:$0xff]
        %v366 = vld [vmem:[#allocation2 + $0x10] sm:$0xff]
        %v367 = vld [vmem:[#allocation2 + $0x18] sm:$0xff]
        %v368 = vld [vmem:[#allocation2 + $0x20] sm:$0xff]
        %v369 = vld [vmem:[#allocation2 + $0x28] sm:$0xff]
        %v370 = vld [vmem:[#allocation2 + $0x30] sm:$0xff]
        %v371 = vld [vmem:[#allocation2 + $0x38] sm:$0xff]
        %v372 = vld [vmem:[#allocation2 + $0x40] sm:$0xff]
        %v373 = vld [vmem:[#allocation2 + $0x48] sm:$0xff]
        %v374 = vld [vmem:[#allocation2 + $0x50] sm:$0xff]
        %v375 = vld [vmem:[#allocation2 + $0x58] sm:$0xff]
        %v376 = vld [vmem:[#allocation2 + $0x60] sm:$0xff]
        %v377 = vld [vmem:[#allocation2 + $0x68] sm:$0xff]
        %v378 = vld [vmem:[#allocation2 + $0x70] sm:$0xff]
        %v379 = vld [vmem:[#allocation2 + $0x78] sm:$0xff]
        %v380 = vld [vmem:[#allocation2 + $0x80] sm:$0xff]
        %v381 = vld [vmem:[#allocation2 + $0x88] sm:$0xff]
        %v382 = vld [vmem:[#allocation2 + $0x90] sm:$0xff]
        %v383 = vld [vmem:[#allocation2 + $0x98] sm:$0xff]
        %v384 = vld [vmem:[#allocation2 + $0xa0] sm:$0xff]
        %v385 = vld [vmem:[#allocation2 + $0xa8] sm:$0xff]
        %v386 = vld [vmem:[#allocation2 + $0xb0] sm:$0xff]
        %v387 = vld [vmem:[#allocation2 + $0xb8] sm:$0xff]
        %v388 = vld [vmem:[#allocation2 + $0xc0] sm:$0xff]
        %v389 = vld [vmem:[#allocation2 + $0xc8] sm:$0xff]
        %v390 = vld [vmem:[#allocation2 + $0xd0] sm:$0xff]
        %v391 = vld [vmem:[#allocation2 + $0xd8] sm:$0xff]
        %v392 = vld [vmem:[#allocation2 + $0xe0] sm:$0xff]
        %v393 = vld [vmem:[#allocation2 + $0xe8] sm:$0xff]
        %v394 = vld [vmem:[#allocation2 + $0xf0] sm:$0xff]
        %v395 = vld [vmem:[#allocation2 + $0xf8] sm:$0xff]
        %v396 = vld [vmem:[%s266] sm:$0xff]
        %v397 = vld [vmem:[%s266 + $0x8] sm:$0xff]
        %v398 = vld [vmem:[%s266 + $0x10] sm:$0xff]
        %v399 = vld [vmem:[%s266 + $0x18] sm:$0xff]
        %v400 = vld [vmem:[%s266 + $0x20] sm:$0xff]
        %v401 = vld [vmem:[%s266 + $0x28] sm:$0xff]
        %v402 = vld [vmem:[%s266 + $0x30] sm:$0xff]
        %v403 = vld [vmem:[%s266 + $0x38] sm:$0xff]
        %v404 = vld [vmem:[%s266 + $0x40] sm:$0xff]
        %v405 = vld [vmem:[%s266 + $0x48] sm:$0xff]
        %v406 = vld [vmem:[%s266 + $0x50] sm:$0xff]
        %v407 = vld [vmem:[%s266 + $0x58] sm:$0xff]
        %v408 = vld [vmem:[%s266 + $0x60] sm:$0xff]
        %v409 = vld [vmem:[%s266 + $0x68] sm:$0xff]
        %v410 = vld [vmem:[%s266 + $0x70] sm:$0xff]
        %v411 = vld [vmem:[%s266 + $0x78] sm:$0xff]
        %v412 = vld [vmem:[%s266 + $0x80] sm:$0xff]
        %v413 = vld [vmem:[%s266 + $0x88] sm:$0xff]
        %v414 = vld [vmem:[%s266 + $0x90] sm:$0xff]
        %v415 = vld [vmem:[%s266 + $0x98] sm:$0xff]
        %v416 = vld [vmem:[%s266 + $0xa0] sm:$0xff]
        %v417 = vld [vmem:[%s266 + $0xa8] sm:$0xff]
        %v418 = vld [vmem:[%s266 + $0xb0] sm:$0xff]
        %v419 = vld [vmem:[%s266 + $0xb8] sm:$0xff]
        %v420 = vld [vmem:[%s266 + $0xc0] sm:$0xff]
        %v421 = vld [vmem:[%s266 + $0xc8] sm:$0xff]
        %v422 = vld [vmem:[%s266 + $0xd0] sm:$0xff]
        %v423 = vld [vmem:[%s266 + $0xd8] sm:$0xff]
        %v424 = vld [vmem:[%s266 + $0xe0] sm:$0xff]
        %v425 = vld [vmem:[%s266 + $0xe8] sm:$0xff]
        %v426 = vld [vmem:[%s266 + $0xf0] sm:$0xff]
        %v427 = vld [vmem:[%s266 + $0xf8] sm:$0xff]
        %v428 = vld [vmem:[%s266 + $0x100] sm:$0xff]
        %v429 = vld [vmem:[%s266 + $0x108] sm:$0xff]
        %v430 = vld [vmem:[%s266 + $0x110] sm:$0xff]
        %v431 = vld [vmem:[%s266 + $0x118] sm:$0xff]
        %v432 = vld [vmem:[%s266 + $0x120] sm:$0xff]
        %v433 = vld [vmem:[%s266 + $0x128] sm:$0xff]
        %v434 = vld [vmem:[%s266 + $0x130] sm:$0xff]
        %v435 = vld [vmem:[%s266 + $0x138] sm:$0xff]
        %v436 = vld [vmem:[%s266 + $0x140] sm:$0xff]
        %v437 = vld [vmem:[%s266 + $0x148] sm:$0xff]
        %v438 = vld [vmem:[%s266 + $0x150] sm:$0xff]
        %v439 = vld [vmem:[%s266 + $0x158] sm:$0xff]
        %v440 = vld [vmem:[%s266 + $0x160] sm:$0xff]
        %v441 = vld [vmem:[%s266 + $0x168] sm:$0xff]
        %v442 = vld [vmem:[%s266 + $0x170] sm:$0xff]
        %v443 = vld [vmem:[%s266 + $0x178] sm:$0xff]
        %v444 = vld [vmem:[%s266 + $0x180] sm:$0xff]
        %v445 = vld [vmem:[%s266 + $0x188] sm:$0xff]
        %v446 = vld [vmem:[%s266 + $0x190] sm:$0xff]
        %v447 = vld [vmem:[%s266 + $0x198] sm:$0xff]
        %v448 = vld [vmem:[%s266 + $0x1a0] sm:$0xff]
        %v449 = vld [vmem:[%s266 + $0x1a8] sm:$0xff]
        %v450 = vld [vmem:[%s266 + $0x1b0] sm:$0xff]
        %v451 = vld [vmem:[%s266 + $0x1b8] sm:$0xff]
        %v452 = vld [vmem:[%s266 + $0x1c0] sm:$0xff]
        %v453 = vld [vmem:[%s266 + $0x1c8] sm:$0xff]
        %v454 = vld [vmem:[%s266 + $0x1d0] sm:$0xff]
        %v455 = vld [vmem:[%s266 + $0x1d8] sm:$0xff]
        %v456 = vld [vmem:[%s266 + $0x1e0] sm:$0xff]
        %v457 = vld [vmem:[%s266 + $0x1e8] sm:$0xff]
        %v458 = vld [vmem:[%s266 + $0x1f0] sm:$0xff]
        %v459 = vld [vmem:[%s266 + $0x1f8] sm:$0xff]
        %v460 = vld [vmem:[%s275] sm:$0xf]
        %v461 = vld [vmem:[%s275 + $0x4] sm:$0xf]
        %v462 = vld [vmem:[%s275 + $0x8] sm:$0xf]
        %v463 = vld [vmem:[%s275 + $0xc] sm:$0xf]
        %v464 = vld [vmem:[%s275 + $0x10] sm:$0xf]
        %v465 = vld [vmem:[%s275 + $0x14] sm:$0xf]
        %v466 = vld [vmem:[%s275 + $0x18] sm:$0xf]
        %v467 = vld [vmem:[%s275 + $0x1c] sm:$0xf]
        %v468 = vld [vmem:[%s275 + $0x20] sm:$0xf]
        %v469 = vld [vmem:[%s275 + $0x24] sm:$0xf]
        %v470 = vld [vmem:[%s275 + $0x28] sm:$0xf]
        %v471 = vld [vmem:[%s275 + $0x2c] sm:$0xf]
        %v472 = vld [vmem:[%s275 + $0x30] sm:$0xf]
        %v473 = vld [vmem:[%s275 + $0x34] sm:$0xf]
        %v474 = vld [vmem:[%s275 + $0x38] sm:$0xf]
        %v475 = vld [vmem:[%s275 + $0x3c] sm:$0xf]
        %v476 = vld [vmem:[%s275 + $0x40] sm:$0xf]
        %v477 = vld [vmem:[%s275 + $0x44] sm:$0xf]
        %v478 = vld [vmem:[%s275 + $0x48] sm:$0xf]
        %v479 = vld [vmem:[%s275 + $0x4c] sm:$0xf]
        %v480 = vld [vmem:[%s275 + $0x50] sm:$0xf]
        %v481 = vld [vmem:[%s275 + $0x54] sm:$0xf]
        %v482 = vld [vmem:[%s275 + $0x58] sm:$0xf]
        %v483 = vld [vmem:[%s275 + $0x5c] sm:$0xf]
        %v484 = vld [vmem:[%s275 + $0x60] sm:$0xf]
        %v485 = vld [vmem:[%s275 + $0x64] sm:$0xf]
        %v486 = vld [vmem:[%s275 + $0x68] sm:$0xf]
        %v487 = vld [vmem:[%s275 + $0x6c] sm:$0xf]
        %v488 = vld [vmem:[%s275 + $0x70] sm:$0xf]
        %v489 = vld [vmem:[%s275 + $0x74] sm:$0xf]
        %v490 = vld [vmem:[%s275 + $0x78] sm:$0xf]
        %v491 = vld [vmem:[%s275 + $0x7c] sm:$0xf]
        %v492 = vld [vmem:[%s275 + $0x80] sm:$0xf]
        %v493 = vld [vmem:[%s275 + $0x84] sm:$0xf]
        %v494 = vld [vmem:[%s275 + $0x88] sm:$0xf]
        %v495 = vld [vmem:[%s275 + $0x8c] sm:$0xf]
        %v496 = vld [vmem:[%s275 + $0x90] sm:$0xf]
        %v497 = vld [vmem:[%s275 + $0x94] sm:$0xf]
        %v498 = vld [vmem:[%s275 + $0x98] sm:$0xf]
        %v499 = vld [vmem:[%s275 + $0x9c] sm:$0xf]
        %v500 = vld [vmem:[%s275 + $0xa0] sm:$0xf]
        %v501 = vld [vmem:[%s275 + $0xa4] sm:$0xf]
        %v502 = vld [vmem:[%s275 + $0xa8] sm:$0xf]
        %v503 = vld [vmem:[%s275 + $0xac] sm:$0xf]
        %v504 = vld [vmem:[%s275 + $0xb0] sm:$0xf]
        %v505 = vld [vmem:[%s275 + $0xb4] sm:$0xf]
        %v506 = vld [vmem:[%s275 + $0xb8] sm:$0xf]
        %v507 = vld [vmem:[%s275 + $0xbc] sm:$0xf]
        %v508 = vld [vmem:[%s275 + $0xc0] sm:$0xf]
        %v509 = vld [vmem:[%s275 + $0xc4] sm:$0xf]
        %v510 = vld [vmem:[%s275 + $0xc8] sm:$0xf]
        %v511 = vld [vmem:[%s275 + $0xcc] sm:$0xf]
        %v512 = vld [vmem:[%s275 + $0xd0] sm:$0xf]
        %v513 = vld [vmem:[%s275 + $0xd4] sm:$0xf]
        %v514 = vld [vmem:[%s275 + $0xd8] sm:$0xf]
        %v515 = vld [vmem:[%s275 + $0xdc] sm:$0xf]
        %v516 = vld [vmem:[%s275 + $0xe0] sm:$0xf]
        %v517 = vld [vmem:[%s275 + $0xe4] sm:$0xf]
        %v518 = vld [vmem:[%s275 + $0xe8] sm:$0xf]
        %v519 = vld [vmem:[%s275 + $0xec] sm:$0xf]
        %v520 = vld [vmem:[%s275 + $0xf0] sm:$0xf]
        %v521 = vld [vmem:[%s275 + $0xf4] sm:$0xf]
        %v522 = vld [vmem:[%s275 + $0xf8] sm:$0xf]
        %v523 = vld [vmem:[%s275 + $0xfc] sm:$0xf]
        %v588 = vunpack.c.l.b16 %v396
        %v589 = vunpack.c.h.b16 %v396
        %v590 = vunpack.c.l.b16 %v397
        %v591 = vunpack.c.h.b16 %v397
        %v592 = vunpack.c.l.b16 %v398
        %v593 = vunpack.c.h.b16 %v398
        %v594 = vunpack.c.l.b16 %v399
        %v595 = vunpack.c.h.b16 %v399
        %v596 = vunpack.c.l.b16 %v400
        %v597 = vunpack.c.h.b16 %v400
        %v598 = vunpack.c.l.b16 %v401
        %v599 = vunpack.c.h.b16 %v401
        %v600 = vunpack.c.l.b16 %v402
        %v601 = vunpack.c.h.b16 %v402
        %v602 = vunpack.c.l.b16 %v403
        %v603 = vunpack.c.h.b16 %v403
        %v604 = vunpack.c.l.b16 %v404
        %v605 = vunpack.c.h.b16 %v404
        %v606 = vunpack.c.l.b16 %v405
        %v607 = vunpack.c.h.b16 %v405
        %v608 = vunpack.c.l.b16 %v406
        %v609 = vunpack.c.h.b16 %v406
        %v610 = vunpack.c.l.b16 %v407
        %v611 = vunpack.c.h.b16 %v407
        %v612 = vunpack.c.l.b16 %v408
        %v613 = vunpack.c.h.b16 %v408
        %v614 = vunpack.c.l.b16 %v409
        %v615 = vunpack.c.h.b16 %v409
        %v616 = vunpack.c.l.b16 %v410
        %v617 = vunpack.c.h.b16 %v410
        %v618 = vunpack.c.l.b16 %v411
        %v619 = vunpack.c.h.b16 %v411
        %v620 = vunpack.c.l.b16 %v412
        %v621 = vunpack.c.h.b16 %v412
        %v622 = vunpack.c.l.b16 %v413
        %v623 = vunpack.c.h.b16 %v413
        %v624 = vunpack.c.l.b16 %v414
        %v625 = vunpack.c.h.b16 %v414
        %v626 = vunpack.c.l.b16 %v415
        %v627 = vunpack.c.h.b16 %v415
        %v628 = vunpack.c.l.b16 %v416
        %v629 = vunpack.c.h.b16 %v416
        %v630 = vunpack.c.l.b16 %v417
        %v631 = vunpack.c.h.b16 %v417
        %v632 = vunpack.c.l.b16 %v418
        %v633 = vunpack.c.h.b16 %v418
        %v634 = vunpack.c.l.b16 %v419
        %v635 = vunpack.c.h.b16 %v419
        %v636 = vunpack.c.l.b16 %v420
        %v637 = vunpack.c.h.b16 %v420
        %v638 = vunpack.c.l.b16 %v421
        %v639 = vunpack.c.h.b16 %v421
        %v640 = vunpack.c.l.b16 %v422
        %v641 = vunpack.c.h.b16 %v422
        %v642 = vunpack.c.l.b16 %v423
        %v643 = vunpack.c.h.b16 %v423
        %v644 = vunpack.c.l.b16 %v424
        %v645 = vunpack.c.h.b16 %v424
        %v646 = vunpack.c.l.b16 %v425
        %v647 = vunpack.c.h.b16 %v425
        %v648 = vunpack.c.l.b16 %v426
        %v649 = vunpack.c.h.b16 %v426
        %v650 = vunpack.c.l.b16 %v427
        %v651 = vunpack.c.h.b16 %v427
        %v652 = vunpack.c.l.b16 %v428
        %v653 = vunpack.c.h.b16 %v428
        %v654 = vunpack.c.l.b16 %v429
        %v655 = vunpack.c.h.b16 %v429
        %v656 = vunpack.c.l.b16 %v430
        %v657 = vunpack.c.h.b16 %v430
        %v658 = vunpack.c.l.b16 %v431
        %v659 = vunpack.c.h.b16 %v431
        %v660 = vunpack.c.l.b16 %v432
        %v661 = vunpack.c.h.b16 %v432
        %v662 = vunpack.c.l.b16 %v433
        %v663 = vunpack.c.h.b16 %v433
        %v664 = vunpack.c.l.b16 %v434
        %v665 = vunpack.c.h.b16 %v434
        %v666 = vunpack.c.l.b16 %v435
        %v667 = vunpack.c.h.b16 %v435
        %v668 = vunpack.c.l.b16 %v436
        %v669 = vunpack.c.h.b16 %v436
        %v670 = vunpack.c.l.b16 %v437
        %v671 = vunpack.c.h.b16 %v437
        %v672 = vunpack.c.l.b16 %v438
        %v673 = vunpack.c.h.b16 %v438
        %v674 = vunpack.c.l.b16 %v439
        %v675 = vunpack.c.h.b16 %v439
        %v676 = vunpack.c.l.b16 %v440
        %v677 = vunpack.c.h.b16 %v440
        %v678 = vunpack.c.l.b16 %v441
        %v679 = vunpack.c.h.b16 %v441
        %v680 = vunpack.c.l.b16 %v442
        %v681 = vunpack.c.h.b16 %v442
        %v682 = vunpack.c.l.b16 %v443
        %v683 = vunpack.c.h.b16 %v443
        %v684 = vunpack.c.l.b16 %v444
        %v685 = vunpack.c.h.b16 %v444
        %v686 = vunpack.c.l.b16 %v445
        %v687 = vunpack.c.h.b16 %v445
        %v688 = vunpack.c.l.b16 %v446
        %v689 = vunpack.c.h.b16 %v446
        %v690 = vunpack.c.l.b16 %v447
        %v691 = vunpack.c.h.b16 %v447
        %v692 = vunpack.c.l.b16 %v448
        %v693 = vunpack.c.h.b16 %v448
        %v694 = vunpack.c.l.b16 %v449
        %v695 = vunpack.c.h.b16 %v449
        %v696 = vunpack.c.l.b16 %v450
        %v697 = vunpack.c.h.b16 %v450
        %v698 = vunpack.c.l.b16 %v451
        %v699 = vunpack.c.h.b16 %v451
        %v700 = vunpack.c.l.b16 %v452
        %v701 = vunpack.c.h.b16 %v452
        %v702 = vunpack.c.l.b16 %v453
        %v703 = vunpack.c.h.b16 %v453
        %v704 = vunpack.c.l.b16 %v454
        %v705 = vunpack.c.h.b16 %v454
        %v706 = vunpack.c.l.b16 %v455
        %v707 = vunpack.c.h.b16 %v455
        %v708 = vunpack.c.l.b16 %v456
        %v709 = vunpack.c.h.b16 %v456
        %v710 = vunpack.c.l.b16 %v457
        %v711 = vunpack.c.h.b16 %v457
        %v712 = vunpack.c.l.b16 %v458
        %v713 = vunpack.c.h.b16 %v458
        %v714 = vunpack.c.l.b16 %v459
        %v715 = vunpack.c.h.b16 %v459
        %v716 = vpack.c.b16 %v592, %v588
        %v717 = vpack.c.b16 %v593, %v589
        %v718 = vpack.c.b16 %v594, %v590
        %v719 = vpack.c.b16 %v595, %v591
        %v720 = vpack.c.b16 %v600, %v596
        %v721 = vpack.c.b16 %v601, %v597
        %v722 = vpack.c.b16 %v602, %v598
        %v723 = vpack.c.b16 %v603, %v599
        %v724 = vpack.c.b16 %v608, %v604
        %v725 = vpack.c.b16 %v609, %v605
        %v726 = vpack.c.b16 %v610, %v606
        %v727 = vpack.c.b16 %v611, %v607
        %v728 = vpack.c.b16 %v616, %v612
        %v729 = vpack.c.b16 %v617, %v613
        %v730 = vpack.c.b16 %v618, %v614
        %v731 = vpack.c.b16 %v619, %v615
        %v732 = vpack.c.b16 %v624, %v620
        %v733 = vpack.c.b16 %v625, %v621
        %v734 = vpack.c.b16 %v626, %v622
        %v735 = vpack.c.b16 %v627, %v623
        %v736 = vpack.c.b16 %v632, %v628
        %v737 = vpack.c.b16 %v633, %v629
        %v738 = vpack.c.b16 %v634, %v630
        %v739 = vpack.c.b16 %v635, %v631
        %v740 = vpack.c.b16 %v640, %v636
        %v741 = vpack.c.b16 %v641, %v637
        %v742 = vpack.c.b16 %v642, %v638
        %v743 = vpack.c.b16 %v643, %v639
        %v744 = vpack.c.b16 %v648, %v644
        %v745 = vpack.c.b16 %v649, %v645
        %v746 = vpack.c.b16 %v650, %v646
        %v747 = vpack.c.b16 %v651, %v647
        %v748 = vpack.c.b16 %v656, %v652
        %v749 = vpack.c.b16 %v657, %v653
        %v750 = vpack.c.b16 %v658, %v654
        %v751 = vpack.c.b16 %v659, %v655
        %v752 = vpack.c.b16 %v664, %v660
        %v753 = vpack.c.b16 %v665, %v661
        %v754 = vpack.c.b16 %v666, %v662
        %v755 = vpack.c.b16 %v667, %v663
        %v756 = vpack.c.b16 %v672, %v668
        %v757 = vpack.c.b16 %v673, %v669
        %v758 = vpack.c.b16 %v674, %v670
        %v759 = vpack.c.b16 %v675, %v671
        %v760 = vpack.c.b16 %v680, %v676
        %v761 = vpack.c.b16 %v681, %v677
        %v762 = vpack.c.b16 %v682, %v678
        %v763 = vpack.c.b16 %v683, %v679
        %v764 = vpack.c.b16 %v688, %v684
        %v765 = vpack.c.b16 %v689, %v685
        %v766 = vpack.c.b16 %v690, %v686
        %v767 = vpack.c.b16 %v691, %v687
        %v768 = vpack.c.b16 %v696, %v692
        %v769 = vpack.c.b16 %v697, %v693
        %v770 = vpack.c.b16 %v698, %v694
        %v771 = vpack.c.b16 %v699, %v695
        %v772 = vpack.c.b16 %v704, %v700
        %v773 = vpack.c.b16 %v705, %v701
        %v774 = vpack.c.b16 %v706, %v702
        %v775 = vpack.c.b16 %v707, %v703
        %v776 = vpack.c.b16 %v712, %v708
        %v777 = vpack.c.b16 %v713, %v709
        %v778 = vpack.c.b16 %v714, %v710
        %v779 = vpack.c.b16 %v715, %v711
        %v908 = vunpack.c.l.b16 %v460
        %v909 = vunpack.c.l.b16 %v461
        %v910 = vunpack.c.l.b16 %v462
        %v911 = vunpack.c.l.b16 %v463
        %v912 = vunpack.c.l.b16 %v464
        %v913 = vunpack.c.l.b16 %v465
        %v914 = vunpack.c.l.b16 %v466
        %v915 = vunpack.c.l.b16 %v467
        %v916 = vunpack.c.l.b16 %v468
        %v917 = vunpack.c.l.b16 %v469
        %v918 = vunpack.c.l.b16 %v470
        %v919 = vunpack.c.l.b16 %v471
        %v920 = vunpack.c.l.b16 %v472
        %v921 = vunpack.c.l.b16 %v473
        %v922 = vunpack.c.l.b16 %v474
        %v923 = vunpack.c.l.b16 %v475
        %v924 = vunpack.c.l.b16 %v476
        %v925 = vunpack.c.l.b16 %v477
        %v926 = vunpack.c.l.b16 %v478
        %v927 = vunpack.c.l.b16 %v479
        %v928 = vunpack.c.l.b16 %v480
        %v929 = vunpack.c.l.b16 %v481
        %v930 = vunpack.c.l.b16 %v482
        %v931 = vunpack.c.l.b16 %v483
        %v932 = vunpack.c.l.b16 %v484
        %v933 = vunpack.c.l.b16 %v485
        %v934 = vunpack.c.l.b16 %v486
        %v935 = vunpack.c.l.b16 %v487
        %v936 = vunpack.c.l.b16 %v488
        %v937 = vunpack.c.l.b16 %v489
        %v938 = vunpack.c.l.b16 %v490
        %v939 = vunpack.c.l.b16 %v491
        %v940 = vunpack.c.l.b16 %v492
        %v941 = vunpack.c.l.b16 %v493
        %v942 = vunpack.c.l.b16 %v494
        %v943 = vunpack.c.l.b16 %v495
        %v944 = vunpack.c.l.b16 %v496
        %v945 = vunpack.c.l.b16 %v497
        %v946 = vunpack.c.l.b16 %v498
        %v947 = vunpack.c.l.b16 %v499
        %v948 = vunpack.c.l.b16 %v500
        %v949 = vunpack.c.l.b16 %v501
        %v950 = vunpack.c.l.b16 %v502
        %v951 = vunpack.c.l.b16 %v503
        %v952 = vunpack.c.l.b16 %v504
        %v953 = vunpack.c.l.b16 %v505
        %v954 = vunpack.c.l.b16 %v506
        %v955 = vunpack.c.l.b16 %v507
        %v956 = vunpack.c.l.b16 %v508
        %v957 = vunpack.c.l.b16 %v509
        %v958 = vunpack.c.l.b16 %v510
        %v959 = vunpack.c.l.b16 %v511
        %v960 = vunpack.c.l.b16 %v512
        %v961 = vunpack.c.l.b16 %v513
        %v962 = vunpack.c.l.b16 %v514
        %v963 = vunpack.c.l.b16 %v515
        %v964 = vunpack.c.l.b16 %v516
        %v965 = vunpack.c.l.b16 %v517
        %v966 = vunpack.c.l.b16 %v518
        %v967 = vunpack.c.l.b16 %v519
        %v968 = vunpack.c.l.b16 %v520
        %v969 = vunpack.c.l.b16 %v521
        %v970 = vunpack.c.l.b16 %v522
        %v971 = vunpack.c.l.b16 %v523
        %v972 = vpack.c.b16 %v909, %v908
        %v973 = vpack.c.b16 %v911, %v910
        %v974 = vpack.c.b16 %v913, %v912
        %v975 = vpack.c.b16 %v915, %v914
        %v976 = vpack.c.b16 %v917, %v916
        %v977 = vpack.c.b16 %v919, %v918
        %v978 = vpack.c.b16 %v921, %v920
        %v979 = vpack.c.b16 %v923, %v922
        %v980 = vpack.c.b16 %v925, %v924
        %v981 = vpack.c.b16 %v927, %v926
        %v982 = vpack.c.b16 %v929, %v928
        %v983 = vpack.c.b16 %v931, %v930
        %v984 = vpack.c.b16 %v933, %v932
        %v985 = vpack.c.b16 %v935, %v934
        %v986 = vpack.c.b16 %v937, %v936
        %v987 = vpack.c.b16 %v939, %v938
        %v988 = vpack.c.b16 %v941, %v940
        %v989 = vpack.c.b16 %v943, %v942
        %v990 = vpack.c.b16 %v945, %v944
        %v991 = vpack.c.b16 %v947, %v946
        %v992 = vpack.c.b16 %v949, %v948
        %v993 = vpack.c.b16 %v951, %v950
        %v994 = vpack.c.b16 %v953, %v952
        %v995 = vpack.c.b16 %v955, %v954
        %v996 = vpack.c.b16 %v957, %v956
        %v997 = vpack.c.b16 %v959, %v958
        %v998 = vpack.c.b16 %v961, %v960
        %v999 = vpack.c.b16 %v963, %v962
        %v1000 = vpack.c.b16 %v965, %v964
        %v1001 = vpack.c.b16 %v967, %v966
        %v1002 = vpack.c.b16 %v969, %v968
        %v1003 = vpack.c.b16 %v971, %v970
        %1036 = vmatprep.subr.bf16.mxu0 0
        %1037 = vmatpush1.bf16.msra.mxu0 %v979
        %1038 = vmatprep.subr.bf16.mxu0 0
        %1039 = vmatpush1.bf16.msra.mxu0 %v978
        %1040 = vmatprep.subr.bf16.mxu0 0
        %1041 = vmatpush1.bf16.msra.mxu0 %v977
        %1042 = vmatprep.subr.bf16.mxu0 0
        %1043 = vmatpush1.bf16.msra.mxu0 %v976
        %1044 = vmatprep.subr.bf16.mxu0 0
        %1045 = vmatpush1.bf16.msra.mxu0 %v975
        %1046 = vmatprep.subr.bf16.mxu0 0
        %1047 = vmatpush1.bf16.msra.mxu0 %v974
        %1048 = vmatprep.subr.bf16.mxu0 0
        %1049 = vmatpush1.bf16.msra.mxu0 %v973
        %1050 = vmatprep.subr.bf16.mxu0 0
        %1051 = vmatpush1.bf16.msra.mxu0 %v972
        %1052 = vmatprep.subr.bf16.mxu0 0
        %1053 = vmatpush2.bf16.msra.mxu0 %v987
        %1054 = vmatprep.subr.bf16.mxu0 0
        %1055 = vmatpush2.bf16.msra.mxu0 %v986
        %1056 = vmatprep.subr.bf16.mxu0 0
        %1057 = vmatpush2.bf16.msra.mxu0 %v985
        %1058 = vmatprep.subr.bf16.mxu0 0
        %1059 = vmatpush2.bf16.msra.mxu0 %v984
        %1060 = vmatprep.subr.bf16.mxu0 0
        %1061 = vmatpush2.bf16.msra.mxu0 %v983
        %1062 = vmatprep.subr.bf16.mxu0 0
        %1063 = vmatpush2.bf16.msra.mxu0 %v982
        %1064 = vmatprep.subr.bf16.mxu0 0
        %1065 = vmatpush2.bf16.msra.mxu0 %v981
        %1066 = vmatprep.subr.bf16.mxu0 0
        %1067 = vmatpush2.bf16.msra.mxu0 %v980
        %1068 = vmatprep.mubr.bf16.mxu0 %v717
        %1069 = vmatmul.mubr.bf16.gmra.mxu0 %v716
        %v1070 = vpop.f32.mrf.mxu0
        %v1071 = vadd.f32 0.0, %v1070
        %v1072 = vpop.f32.mrf.mxu0
        %v1073 = vpop.f32.mrf.mxu0
        %v1074 = vadd.f32 0.0, %v1073
        %v1075 = vpop.f32.mrf.mxu0
        %1076 = vmatprep.mubr.bf16.mxu0 %v721
        %1077 = vmatmul.mubr.bf16.gmra.mxu0 %v720
        %v1078 = vpop.f32.mrf.mxu0
        %v1079 = vadd.f32 0.0, %v1078
        %v1080 = vpop.f32.mrf.mxu0
        %v1081 = vpop.f32.mrf.mxu0
        %v1082 = vadd.f32 0.0, %v1081
        %v1083 = vpop.f32.mrf.mxu0
        %1084 = vmatprep.mubr.bf16.mxu0 %v725
        %1085 = vmatmul.mubr.bf16.gmra.mxu0 %v724
        %v1086 = vpop.f32.mrf.mxu0
        %v1087 = vadd.f32 0.0, %v1086
        %v1088 = vpop.f32.mrf.mxu0
        %v1089 = vpop.f32.mrf.mxu0
        %v1090 = vadd.f32 0.0, %v1089
        %v1091 = vpop.f32.mrf.mxu0
        %1092 = vmatprep.mubr.bf16.mxu0 %v729
        %1093 = vmatmul.mubr.bf16.gmra.mxu0 %v728
        %v1094 = vpop.f32.mrf.mxu0
        %v1095 = vadd.f32 0.0, %v1094
        %v1096 = vpop.f32.mrf.mxu0
        %v1097 = vpop.f32.mrf.mxu0
        %v1098 = vadd.f32 0.0, %v1097
        %v1099 = vpop.f32.mrf.mxu0
        %1100 = vmatprep.mubr.bf16.mxu0 %v733
        %1101 = vmatmul.mubr.bf16.gmra.mxu0 %v732
        %v1102 = vpop.f32.mrf.mxu0
        %v1103 = vadd.f32 0.0, %v1102
        %v1104 = vpop.f32.mrf.mxu0
        %v1105 = vpop.f32.mrf.mxu0
        %v1106 = vadd.f32 0.0, %v1105
        %v1107 = vpop.f32.mrf.mxu0
        %1108 = vmatprep.mubr.bf16.mxu0 %v737
        %1109 = vmatmul.mubr.bf16.gmra.mxu0 %v736
        %v1110 = vpop.f32.mrf.mxu0
        %v1111 = vadd.f32 0.0, %v1110
        %v1112 = vpop.f32.mrf.mxu0
        %v1113 = vpop.f32.mrf.mxu0
        %v1114 = vadd.f32 0.0, %v1113
        %v1115 = vpop.f32.mrf.mxu0
        %1116 = vmatprep.mubr.bf16.mxu0 %v741
        %1117 = vmatmul.mubr.bf16.gmra.mxu0 %v740
        %v1118 = vpop.f32.mrf.mxu0
        %v1119 = vadd.f32 0.0, %v1118
        %v1120 = vpop.f32.mrf.mxu0
        %v1121 = vpop.f32.mrf.mxu0
        %v1122 = vadd.f32 0.0, %v1121
        %v1123 = vpop.f32.mrf.mxu0
        %1124 = vmatprep.mubr.bf16.mxu0 %v745
        %1125 = vmatmul.mubr.bf16.gmra.mxu0 %v744
        %v1126 = vpop.f32.mrf.mxu0
        %v1127 = vadd.f32 0.0, %v1126
        %v1128 = vpop.f32.mrf.mxu0
        %v1129 = vpop.f32.mrf.mxu0
        %v1130 = vadd.f32 0.0, %v1129
        %v1131 = vpop.f32.mrf.mxu0
        %1132 = vmatprep.mubr.bf16.mxu0 %v749
        %1133 = vmatmul.mubr.bf16.gmra.mxu0 %v748
        %v1134 = vpop.f32.mrf.mxu0
        %v1135 = vadd.f32 0.0, %v1134
        %v1136 = vpop.f32.mrf.mxu0
        %v1137 = vpop.f32.mrf.mxu0
        %v1138 = vadd.f32 0.0, %v1137
        %v1139 = vpop.f32.mrf.mxu0
        %1140 = vmatprep.mubr.bf16.mxu0 %v753
        %1141 = vmatmul.mubr.bf16.gmra.mxu0 %v752
        %v1142 = vpop.f32.mrf.mxu0
        %v1143 = vadd.f32 0.0, %v1142
        %v1144 = vpop.f32.mrf.mxu0
        %v1145 = vpop.f32.mrf.mxu0
        %v1146 = vadd.f32 0.0, %v1145
        %v1147 = vpop.f32.mrf.mxu0
        %1148 = vmatprep.mubr.bf16.mxu0 %v757
        %1149 = vmatmul.mubr.bf16.gmra.mxu0 %v756
        %v1150 = vpop.f32.mrf.mxu0
        %v1151 = vadd.f32 0.0, %v1150
        %v1152 = vpop.f32.mrf.mxu0
        %v1153 = vpop.f32.mrf.mxu0
        %v1154 = vadd.f32 0.0, %v1153
        %v1155 = vpop.f32.mrf.mxu0
        %1156 = vmatprep.mubr.bf16.mxu0 %v761
        %1157 = vmatmul.mubr.bf16.gmra.mxu0 %v760
        %v1158 = vpop.f32.mrf.mxu0
        %v1159 = vadd.f32 0.0, %v1158
        %v1160 = vpop.f32.mrf.mxu0
        %v1161 = vpop.f32.mrf.mxu0
        %v1162 = vadd.f32 0.0, %v1161
        %v1163 = vpop.f32.mrf.mxu0
        %1164 = vmatprep.mubr.bf16.mxu0 %v765
        %1165 = vmatmul.mubr.bf16.gmra.mxu0 %v764
        %v1166 = vpop.f32.mrf.mxu0
        %v1167 = vadd.f32 0.0, %v1166
        %v1168 = vpop.f32.mrf.mxu0
        %v1169 = vpop.f32.mrf.mxu0
        %v1170 = vadd.f32 0.0, %v1169
        %v1171 = vpop.f32.mrf.mxu0
        %1172 = vmatprep.mubr.bf16.mxu0 %v769
        %1173 = vmatmul.mubr.bf16.gmra.mxu0 %v768
        %v1174 = vpop.f32.mrf.mxu0
        %v1175 = vadd.f32 0.0, %v1174
        %v1176 = vpop.f32.mrf.mxu0
        %v1177 = vpop.f32.mrf.mxu0
        %v1178 = vadd.f32 0.0, %v1177
        %v1179 = vpop.f32.mrf.mxu0
        %1180 = vmatprep.mubr.bf16.mxu0 %v773
        %1181 = vmatmul.mubr.bf16.gmra.mxu0 %v772
        %v1182 = vpop.f32.mrf.mxu0
        %v1183 = vadd.f32 0.0, %v1182
        %v1184 = vpop.f32.mrf.mxu0
        %v1185 = vpop.f32.mrf.mxu0
        %v1186 = vadd.f32 0.0, %v1185
        %v1187 = vpop.f32.mrf.mxu0
        %1188 = vmatprep.mubr.bf16.mxu0 %v777
        %1189 = vmatmul.mubr.bf16.gmra.mxu0 %v776
        %v1190 = vpop.f32.mrf.mxu0
        %v1191 = vadd.f32 0.0, %v1190
        %v1192 = vpop.f32.mrf.mxu0
        %v1193 = vpop.f32.mrf.mxu0
        %v1194 = vadd.f32 0.0, %v1193
        %v1195 = vpop.f32.mrf.mxu0
        %1196 = vdwg.mxu0
        %1197 = vmatprep.subr.bf16.mxu0 0
        %1198 = vmatpush1.bf16.msra.mxu0 %v995
        %1199 = vmatprep.subr.bf16.mxu0 0
        %1200 = vmatpush1.bf16.msra.mxu0 %v994
        %1201 = vmatprep.subr.bf16.mxu0 0
        %1202 = vmatpush1.bf16.msra.mxu0 %v993
        %1203 = vmatprep.subr.bf16.mxu0 0
        %1204 = vmatpush1.bf16.msra.mxu0 %v992
        %1205 = vmatprep.subr.bf16.mxu0 0
        %1206 = vmatpush1.bf16.msra.mxu0 %v991
        %1207 = vmatprep.subr.bf16.mxu0 0
        %1208 = vmatpush1.bf16.msra.mxu0 %v990
        %1209 = vmatprep.subr.bf16.mxu0 0
        %1210 = vmatpush1.bf16.msra.mxu0 %v989
        %1211 = vmatprep.subr.bf16.mxu0 0
        %1212 = vmatpush1.bf16.msra.mxu0 %v988
        %1213 = vmatprep.subr.bf16.mxu0 0
        %1214 = vmatpush2.bf16.msra.mxu0 %v1003
        %1215 = vmatprep.subr.bf16.mxu0 0
        %1216 = vmatpush2.bf16.msra.mxu0 %v1002
        %1217 = vmatprep.subr.bf16.mxu0 0
        %1218 = vmatpush2.bf16.msra.mxu0 %v1001
        %1219 = vmatprep.subr.bf16.mxu0 0
        %1220 = vmatpush2.bf16.msra.mxu0 %v1000
        %1221 = vmatprep.subr.bf16.mxu0 0
        %1222 = vmatpush2.bf16.msra.mxu0 %v999
        %1223 = vmatprep.subr.bf16.mxu0 0
        %1224 = vmatpush2.bf16.msra.mxu0 %v998
        %1225 = vmatprep.subr.bf16.mxu0 0
        %1226 = vmatpush2.bf16.msra.mxu0 %v997
        %1227 = vmatprep.subr.bf16.mxu0 0
        %1228 = vmatpush2.bf16.msra.mxu0 %v996
        %1229 = vmatprep.mubr.bf16.mxu0 %v719
        %1230 = vmatmul.mubr.bf16.gmra.mxu0 %v718
        %v1231 = vpop.f32.mrf.mxu0
        %v1232 = vadd.f32 %v1071, %v1231
        %v1233 = vpop.f32.mrf.mxu0
        %v1234 = vpop.f32.mrf.mxu0
        %v1235 = vadd.f32 %v1074, %v1234
        %v1236 = vpop.f32.mrf.mxu0
        %1237 = vmatprep.mubr.bf16.mxu0 %v723
        %1238 = vmatmul.mubr.bf16.gmra.mxu0 %v722
        %v1239 = vpop.f32.mrf.mxu0
        %v1240 = vadd.f32 %v1079, %v1239
        %v1241 = vpop.f32.mrf.mxu0
        %v1242 = vpop.f32.mrf.mxu0
        %v1243 = vadd.f32 %v1082, %v1242
        %v1244 = vpop.f32.mrf.mxu0
        %1245 = vmatprep.mubr.bf16.mxu0 %v727
        %1246 = vmatmul.mubr.bf16.gmra.mxu0 %v726
        %v1247 = vpop.f32.mrf.mxu0
        %v1248 = vadd.f32 %v1087, %v1247
        %v1249 = vpop.f32.mrf.mxu0
        %v1250 = vpop.f32.mrf.mxu0
        %v1251 = vadd.f32 %v1090, %v1250
        %v1252 = vpop.f32.mrf.mxu0
        %1253 = vmatprep.mubr.bf16.mxu0 %v731
        %1254 = vmatmul.mubr.bf16.gmra.mxu0 %v730
        %v1255 = vpop.f32.mrf.mxu0
        %v1256 = vadd.f32 %v1095, %v1255
        %v1257 = vpop.f32.mrf.mxu0
        %v1258 = vpop.f32.mrf.mxu0
        %v1259 = vadd.f32 %v1098, %v1258
        %v1260 = vpop.f32.mrf.mxu0
        %1261 = vmatprep.mubr.bf16.mxu0 %v735
        %1262 = vmatmul.mubr.bf16.gmra.mxu0 %v734
        %v1263 = vpop.f32.mrf.mxu0
        %v1264 = vadd.f32 %v1103, %v1263
        %v1265 = vpop.f32.mrf.mxu0
        %v1266 = vpop.f32.mrf.mxu0
        %v1267 = vadd.f32 %v1106, %v1266
        %v1268 = vpop.f32.mrf.mxu0
        %1269 = vmatprep.mubr.bf16.mxu0 %v739
        %1270 = vmatmul.mubr.bf16.gmra.mxu0 %v738
        %v1271 = vpop.f32.mrf.mxu0
        %v1272 = vadd.f32 %v1111, %v1271
        %v1273 = vpop.f32.mrf.mxu0
        %v1274 = vpop.f32.mrf.mxu0
        %v1275 = vadd.f32 %v1114, %v1274
        %v1276 = vpop.f32.mrf.mxu0
        %1277 = vmatprep.mubr.bf16.mxu0 %v743
        %1278 = vmatmul.mubr.bf16.gmra.mxu0 %v742
        %v1279 = vpop.f32.mrf.mxu0
        %v1280 = vadd.f32 %v1119, %v1279
        %v1281 = vpop.f32.mrf.mxu0
        %v1282 = vpop.f32.mrf.mxu0
        %v1283 = vadd.f32 %v1122, %v1282
        %v1284 = vpop.f32.mrf.mxu0
        %1285 = vmatprep.mubr.bf16.mxu0 %v747
        %1286 = vmatmul.mubr.bf16.gmra.mxu0 %v746
        %v1287 = vpop.f32.mrf.mxu0
        %v1288 = vadd.f32 %v1127, %v1287
        %v1289 = vpop.f32.mrf.mxu0
        %v1290 = vpop.f32.mrf.mxu0
        %v1291 = vadd.f32 %v1130, %v1290
        %v1292 = vpop.f32.mrf.mxu0
        %1293 = vmatprep.mubr.bf16.mxu0 %v751
        %1294 = vmatmul.mubr.bf16.gmra.mxu0 %v750
        %v1295 = vpop.f32.mrf.mxu0
        %v1296 = vadd.f32 %v1135, %v1295
        %v1297 = vpop.f32.mrf.mxu0
        %v1298 = vpop.f32.mrf.mxu0
        %v1299 = vadd.f32 %v1138, %v1298
        %v1300 = vpop.f32.mrf.mxu0
        %1301 = vmatprep.mubr.bf16.mxu0 %v755
        %1302 = vmatmul.mubr.bf16.gmra.mxu0 %v754
        %v1303 = vpop.f32.mrf.mxu0
        %v1304 = vadd.f32 %v1143, %v1303
        %v1305 = vpop.f32.mrf.mxu0
        %v1306 = vpop.f32.mrf.mxu0
        %v1307 = vadd.f32 %v1146, %v1306
        %v1308 = vpop.f32.mrf.mxu0
        %1309 = vmatprep.mubr.bf16.mxu0 %v759
        %1310 = vmatmul.mubr.bf16.gmra.mxu0 %v758
        %v1311 = vpop.f32.mrf.mxu0
        %v1312 = vadd.f32 %v1151, %v1311
        %v1313 = vpop.f32.mrf.mxu0
        %v1314 = vpop.f32.mrf.mxu0
        %v1315 = vadd.f32 %v1154, %v1314
        %v1316 = vpop.f32.mrf.mxu0
        %1317 = vmatprep.mubr.bf16.mxu0 %v763
        %1318 = vmatmul.mubr.bf16.gmra.mxu0 %v762
        %v1319 = vpop.f32.mrf.mxu0
        %v1320 = vadd.f32 %v1159, %v1319
        %v1321 = vpop.f32.mrf.mxu0
        %v1322 = vpop.f32.mrf.mxu0
        %v1323 = vadd.f32 %v1162, %v1322
        %v1324 = vpop.f32.mrf.mxu0
        %1325 = vmatprep.mubr.bf16.mxu0 %v767
        %1326 = vmatmul.mubr.bf16.gmra.mxu0 %v766
        %v1327 = vpop.f32.mrf.mxu0
        %v1328 = vadd.f32 %v1167, %v1327
        %v1329 = vpop.f32.mrf.mxu0
        %v1330 = vpop.f32.mrf.mxu0
        %v1331 = vadd.f32 %v1170, %v1330
        %v1332 = vpop.f32.mrf.mxu0
        %1333 = vmatprep.mubr.bf16.mxu0 %v771
        %1334 = vmatmul.mubr.bf16.gmra.mxu0 %v770
        %v1335 = vpop.f32.mrf.mxu0
        %v1336 = vadd.f32 %v1175, %v1335
        %v1337 = vpop.f32.mrf.mxu0
        %v1338 = vpop.f32.mrf.mxu0
        %v1339 = vadd.f32 %v1178, %v1338
        %v1340 = vpop.f32.mrf.mxu0
        %1341 = vmatprep.mubr.bf16.mxu0 %v775
        %1342 = vmatmul.mubr.bf16.gmra.mxu0 %v774
        %v1343 = vpop.f32.mrf.mxu0
        %v1344 = vadd.f32 %v1183, %v1343
        %v1345 = vpop.f32.mrf.mxu0
        %v1346 = vpop.f32.mrf.mxu0
        %v1347 = vadd.f32 %v1186, %v1346
        %v1348 = vpop.f32.mrf.mxu0
        %1349 = vmatprep.mubr.bf16.mxu0 %v779
        %1350 = vmatmul.mubr.bf16.gmra.mxu0 %v778
        %v1351 = vpop.f32.mrf.mxu0
        %v1352 = vadd.f32 %v1191, %v1351
        %v1353 = vpop.f32.mrf.mxu0
        %v1354 = vpop.f32.mrf.mxu0
        %v1355 = vadd.f32 %v1194, %v1354
        %v1356 = vpop.f32.mrf.mxu0
        %1357 = vdwg.mxu0
        %v1358 = vadd.f32 %v364, %v1232
        %v1359 = vadd.f32 %v365, %v1235
        %v1360 = vadd.f32 %v366, %v1240
        %v1361 = vadd.f32 %v367, %v1243
        %v1362 = vadd.f32 %v368, %v1248
        %v1363 = vadd.f32 %v369, %v1251
        %v1364 = vadd.f32 %v370, %v1256
        %v1365 = vadd.f32 %v371, %v1259
        %v1366 = vadd.f32 %v372, %v1264
        %v1367 = vadd.f32 %v373, %v1267
        %v1368 = vadd.f32 %v374, %v1272
        %v1369 = vadd.f32 %v375, %v1275
        %v1370 = vadd.f32 %v376, %v1280
        %v1371 = vadd.f32 %v377, %v1283
        %v1372 = vadd.f32 %v378, %v1288
        %v1373 = vadd.f32 %v379, %v1291
        %v1374 = vadd.f32 %v380, %v1296
        %v1375 = vadd.f32 %v381, %v1299
        %v1376 = vadd.f32 %v382, %v1304
        %v1377 = vadd.f32 %v383, %v1307
        %v1378 = vadd.f32 %v384, %v1312
        %v1379 = vadd.f32 %v385, %v1315
        %v1380 = vadd.f32 %v386, %v1320
        %v1381 = vadd.f32 %v387, %v1323
        %v1382 = vadd.f32 %v388, %v1328
        %v1383 = vadd.f32 %v389, %v1331
        %v1384 = vadd.f32 %v390, %v1336
        %v1385 = vadd.f32 %v391, %v1339
        %v1386 = vadd.f32 %v392, %v1344
        %v1387 = vadd.f32 %v393, %v1347
        %v1388 = vadd.f32 %v394, %v1352
        %v1389 = vadd.f32 %v395, %v1355
        %1390 = vst [vmem:[#allocation2] sm:$0xff] %v1358
        %1391 = vst [vmem:[#allocation2 + $0x8] sm:$0xff] %v1359
        %1392 = vst [vmem:[#allocation2 + $0x10] sm:$0xff] %v1360
        %1393 = vst [vmem:[#allocation2 + $0x18] sm:$0xff] %v1361
        %1394 = vst [vmem:[#allocation2 + $0x20] sm:$0xff] %v1362
        %1395 = vst [vmem:[#allocation2 + $0x28] sm:$0xff] %v1363
        %1396 = vst [vmem:[#allocation2 + $0x30] sm:$0xff] %v1364
        %1397 = vst [vmem:[#allocation2 + $0x38] sm:$0xff] %v1365
        %1398 = vst [vmem:[#allocation2 + $0x40] sm:$0xff] %v1366
        %1399 = vst [vmem:[#allocation2 + $0x48] sm:$0xff] %v1367
        %1400 = vst [vmem:[#allocation2 + $0x50] sm:$0xff] %v1368
        %1401 = vst [vmem:[#allocation2 + $0x58] sm:$0xff] %v1369
        %1402 = vst [vmem:[#allocation2 + $0x60] sm:$0xff] %v1370
        %1403 = vst [vmem:[#allocation2 + $0x68] sm:$0xff] %v1371
        %1404 = vst [vmem:[#allocation2 + $0x70] sm:$0xff] %v1372
        %1405 = vst [vmem:[#allocation2 + $0x78] sm:$0xff] %v1373
        %1406 = vst [vmem:[#allocation2 + $0x80] sm:$0xff] %v1374
        %1407 = vst [vmem:[#allocation2 + $0x88] sm:$0xff] %v1375
        %1408 = vst [vmem:[#allocation2 + $0x90] sm:$0xff] %v1376
        %1409 = vst [vmem:[#allocation2 + $0x98] sm:$0xff] %v1377
        %1410 = vst [vmem:[#allocation2 + $0xa0] sm:$0xff] %v1378
        %1411 = vst [vmem:[#allocation2 + $0xa8] sm:$0xff] %v1379
        %1412 = vst [vmem:[#allocation2 + $0xb0] sm:$0xff] %v1380
        %1413 = vst [vmem:[#allocation2 + $0xb8] sm:$0xff] %v1381
        %1414 = vst [vmem:[#allocation2 + $0xc0] sm:$0xff] %v1382
        %1415 = vst [vmem:[#allocation2 + $0xc8] sm:$0xff] %v1383
        %1416 = vst [vmem:[#allocation2 + $0xd0] sm:$0xff] %v1384
        %1417 = vst [vmem:[#allocation2 + $0xd8] sm:$0xff] %v1385
        %1418 = vst [vmem:[#allocation2 + $0xe0] sm:$0xff] %v1386
        %1419 = vst [vmem:[#allocation2 + $0xe8] sm:$0xff] %v1387
        %1420 = vst [vmem:[#allocation2 + $0xf0] sm:$0xff] %v1388
        %1421 = vst [vmem:[#allocation2 + $0xf8] sm:$0xff] %v1389
        %p1422 = scmp.eq.s32.totalorder %s32, 1
        // Predicated region
        $region57: #{tpu_custom_call.1} parent=35 // pred_check
          %p1423 = pneg %p1422
        $region58: #{tpu_custom_call.1} parent=35 // pred_check_branch
          %1425 = sbr.rel (%p1423) target = $region60
        $region59: #{tpu_custom_call.1} parent=35 // pred_region
          %v1426 = vld [vmem:[#allocation2] sm:$0xff]
          %v1427 = vld [vmem:[#allocation2 + $0x8] sm:$0xff]
          %v1428 = vld [vmem:[#allocation2 + $0x10] sm:$0xff]
          %v1429 = vld [vmem:[#allocation2 + $0x18] sm:$0xff]
          %v1430 = vld [vmem:[#allocation2 + $0x20] sm:$0xff]
          %v1431 = vld [vmem:[#allocation2 + $0x28] sm:$0xff]
          %v1432 = vld [vmem:[#allocation2 + $0x30] sm:$0xff]
          %v1433 = vld [vmem:[#allocation2 + $0x38] sm:$0xff]
          %v1434 = vld [vmem:[#allocation2 + $0x40] sm:$0xff]
          %v1435 = vld [vmem:[#allocation2 + $0x48] sm:$0xff]
          %v1436 = vld [vmem:[#allocation2 + $0x50] sm:$0xff]
          %v1437 = vld [vmem:[#allocation2 + $0x58] sm:$0xff]
          %v1438 = vld [vmem:[#allocation2 + $0x60] sm:$0xff]
          %v1439 = vld [vmem:[#allocation2 + $0x68] sm:$0xff]
          %v1440 = vld [vmem:[#allocation2 + $0x70] sm:$0xff]
          %v1441 = vld [vmem:[#allocation2 + $0x78] sm:$0xff]
          %v1442 = vld [vmem:[#allocation2 + $0x80] sm:$0xff]
          %v1443 = vld [vmem:[#allocation2 + $0x88] sm:$0xff]
          %v1444 = vld [vmem:[#allocation2 + $0x90] sm:$0xff]
          %v1445 = vld [vmem:[#allocation2 + $0x98] sm:$0xff]
          %v1446 = vld [vmem:[#allocation2 + $0xa0] sm:$0xff]
          %v1447 = vld [vmem:[#allocation2 + $0xa8] sm:$0xff]
          %v1448 = vld [vmem:[#allocation2 + $0xb0] sm:$0xff]
          %v1449 = vld [vmem:[#allocation2 + $0xb8] sm:$0xff]
          %v1450 = vld [vmem:[#allocation2 + $0xc0] sm:$0xff]
          %v1451 = vld [vmem:[#allocation2 + $0xc8] sm:$0xff]
          %v1452 = vld [vmem:[#allocation2 + $0xd0] sm:$0xff]
          %v1453 = vld [vmem:[#allocation2 + $0xd8] sm:$0xff]
          %v1454 = vld [vmem:[#allocation2 + $0xe0] sm:$0xff]
          %v1455 = vld [vmem:[#allocation2 + $0xe8] sm:$0xff]
          %v1456 = vld [vmem:[#allocation2 + $0xf0] sm:$0xff]
          %v1457 = vld [vmem:[#allocation2 + $0xf8] sm:$0xff]
          %v1458 = vld [vmem:[#allocation8] sm:$0x1]
          %v1460 = vlaneseq
          %v1461 = vshrl.u32 %v1460, 7
          %v1462 = vsub.s32 0, %v1461
          %v1463 = vrot.slane %v1458, %v1462
          %v1465 = vadd.f32 %v1426, %v1463
          %v1466 = vadd.f32 %v1427, %v1463
          %v1467 = vadd.f32 %v1428, %v1463
          %v1468 = vadd.f32 %v1429, %v1463
          %v1469 = vadd.f32 %v1430, %v1463
          %v1470 = vadd.f32 %v1431, %v1463
          %v1471 = vadd.f32 %v1432, %v1463
          %v1472 = vadd.f32 %v1433, %v1463
          %v1473 = vadd.f32 %v1434, %v1463
          %v1474 = vadd.f32 %v1435, %v1463
          %v1475 = vadd.f32 %v1436, %v1463
          %v1476 = vadd.f32 %v1437, %v1463
          %v1477 = vadd.f32 %v1438, %v1463
          %v1478 = vadd.f32 %v1439, %v1463
          %v1479 = vadd.f32 %v1440, %v1463
          %v1480 = vadd.f32 %v1441, %v1463
          %v1481 = vadd.f32 %v1442, %v1463
          %v1482 = vadd.f32 %v1443, %v1463
          %v1483 = vadd.f32 %v1444, %v1463
          %v1484 = vadd.f32 %v1445, %v1463
          %v1485 = vadd.f32 %v1446, %v1463
          %v1486 = vadd.f32 %v1447, %v1463
          %v1487 = vadd.f32 %v1448, %v1463
          %v1488 = vadd.f32 %v1449, %v1463
          %v1489 = vadd.f32 %v1450, %v1463
          %v1490 = vadd.f32 %v1451, %v1463
          %v1491 = vadd.f32 %v1452, %v1463
          %v1492 = vadd.f32 %v1453, %v1463
          %v1493 = vadd.f32 %v1454, %v1463
          %v1494 = vadd.f32 %v1455, %v1463
          %v1495 = vadd.f32 %v1456, %v1463
          %v1496 = vadd.f32 %v1457, %v1463
          %v1497 = vmax.f32 %v1465, 0.0
          %v1498 = vmax.f32 %v1466, 0.0
          %v1499 = vmax.f32 %v1467, 0.0
          %v1500 = vmax.f32 %v1468, 0.0
          %v1501 = vmax.f32 %v1469, 0.0
          %v1502 = vmax.f32 %v1470, 0.0
          %v1503 = vmax.f32 %v1471, 0.0
          %v1504 = vmax.f32 %v1472, 0.0
          %v1505 = vmax.f32 %v1473, 0.0
          %v1506 = vmax.f32 %v1474, 0.0
          %v1507 = vmax.f32 %v1475, 0.0
          %v1508 = vmax.f32 %v1476, 0.0
          %v1509 = vmax.f32 %v1477, 0.0
          %v1510 = vmax.f32 %v1478, 0.0
          %v1511 = vmax.f32 %v1479, 0.0
          %v1512 = vmax.f32 %v1480, 0.0
          %v1513 = vmax.f32 %v1481, 0.0
          %v1514 = vmax.f32 %v1482, 0.0
          %v1515 = vmax.f32 %v1483, 0.0
          %v1516 = vmax.f32 %v1484, 0.0
          %v1517 = vmax.f32 %v1485, 0.0
          %v1518 = vmax.f32 %v1486, 0.0
          %v1519 = vmax.f32 %v1487, 0.0
          %v1520 = vmax.f32 %v1488, 0.0
          %v1521 = vmax.f32 %v1489, 0.0
          %v1522 = vmax.f32 %v1490, 0.0
          %v1523 = vmax.f32 %v1491, 0.0
          %v1524 = vmax.f32 %v1492, 0.0
          %v1525 = vmax.f32 %v1493, 0.0
          %v1526 = vmax.f32 %v1494, 0.0
          %v1527 = vmax.f32 %v1495, 0.0
          %v1528 = vmax.f32 %v1496, 0.0
          %v1529 = vld [vmem:[%s288] sm:$0xff]
          %v1530 = vpack.c.bf16 %v1498, %v1497
          %v1531 = vpack.c.bf16 %v1500, %v1499
          %v1532 = vpack.c.bf16 %v1502, %v1501
          %v1533 = vpack.c.bf16 %v1504, %v1503
          %v1534 = vpack.c.bf16 %v1506, %v1505
          %v1535 = vpack.c.bf16 %v1508, %v1507
          %v1536 = vpack.c.bf16 %v1510, %v1509
          %v1537 = vpack.c.bf16 %v1512, %v1511
          %v1538 = vpack.c.bf16 %v1514, %v1513
          %v1539 = vpack.c.bf16 %v1516, %v1515
          %v1540 = vpack.c.bf16 %v1518, %v1517
          %v1541 = vpack.c.bf16 %v1520, %v1519
          %v1542 = vpack.c.bf16 %v1522, %v1521
          %v1543 = vpack.c.bf16 %v1524, %v1523
          %v1544 = vpack.c.bf16 %v1526, %v1525
          %v1545 = vpack.c.bf16 %v1528, %v1527
          %v1547 = vunpack.c.l.b16 %v1529
          %v1548 = vunpack.c.h.b16 %v1529
          %v1549 = vpack.c.b16 %v1547, %v1547
          %v1550 = vpack.c.b16 %v1548, %v1548
          %1553 = vmatprep.subr.bf16.mxu0 0
          %1554 = vmatpush1.bf16.msra.mxu0 %v1537
          %1555 = vmatprep.subr.bf16.mxu0 0
          %1556 = vmatpush1.bf16.msra.mxu0 %v1536
          %1557 = vmatprep.subr.bf16.mxu0 0
          %1558 = vmatpush1.bf16.msra.mxu0 %v1535
          %1559 = vmatprep.subr.bf16.mxu0 0
          %1560 = vmatpush1.bf16.msra.mxu0 %v1534
          %1561 = vmatprep.subr.bf16.mxu0 0
          %1562 = vmatpush1.bf16.msra.mxu0 %v1533
          %1563 = vmatprep.subr.bf16.mxu0 0
          %1564 = vmatpush1.bf16.msra.mxu0 %v1532
          %1565 = vmatprep.subr.bf16.mxu0 0
          %1566 = vmatpush1.bf16.msra.mxu0 %v1531
          %1567 = vmatprep.subr.bf16.mxu0 0
          %1568 = vmatpush1.bf16.msra.mxu0 %v1530
          %1569 = vmatprep.subr.bf16.mxu0 0
          %1570 = vmatpush2.bf16.msra.mxu0 %v1545
          %1571 = vmatprep.subr.bf16.mxu0 0
          %1572 = vmatpush2.bf16.msra.mxu0 %v1544
          %1573 = vmatprep.subr.bf16.mxu0 0
          %1574 = vmatpush2.bf16.msra.mxu0 %v1543
          %1575 = vmatprep.subr.bf16.mxu0 0
          %1576 = vmatpush2.bf16.msra.mxu0 %v1542
          %1577 = vmatprep.subr.bf16.mxu0 0
          %1578 = vmatpush2.bf16.msra.mxu0 %v1541
          %1579 = vmatprep.subr.bf16.mxu0 0
          %1580 = vmatpush2.bf16.msra.mxu0 %v1540
          %1581 = vmatprep.subr.bf16.mxu0 0
          %1582 = vmatpush2.bf16.msra.mxu0 %v1539
          %1583 = vmatprep.subr.bf16.mxu0 0
          %1584 = vmatpush2.bf16.msra.mxu0 %v1538
          %1585 = vmatprep.mubr.bf16.mxu0 %v1550
          %1586 = vmatmul.mubr.bf16.gmra.mxu0 %v1549
          %v1587 = vpop.f32.mrf.mxu0
          %v1588 = vadd.f32 0.0, %v1587
          %v1589 = vpop.f32.mrf.mxu0
          %v1590 = vpop.f32.mrf.mxu0
          %v1591 = vpop.f32.mrf.mxu0
          %1592 = vdwg.mxu0
          %1593 = vst [vmem:[%s322] sm:$0xff] %v1588
        $region60: #{tpu_custom_call.1} parent=35 // pred_fallthru
          _
        %s1594 = sand.u32 %s148, 1
        %s1595 = scalar_lea.sflag [#allocation5], %s1594
        %s1596 = sand.u32 %s148, 1
        %s1597 = smul.addr %s1596, 8
        %s1598 = scalar_lea.vmem [#allocation11], %s1597
        // Predicated region
        $region61: #{tpu_custom_call.1} parent=35 // pred_check
          %p1599 = pneg %p158
        $region62: #{tpu_custom_call.1} parent=35 // pred_check_branch
          %1601 = sbr.rel (%p1599) target = $region64
        $region63: #{tpu_custom_call.1} parent=35 // pred_region
          %s1603 = ssub.s32 128, 128
          %1604 = vsyncadd %s1595, %s1603
          %s1605 = smul.addr %s31, 128
          %s1606 = scalar_lea.hbm %s4, %s1605
          %s1608 = sshll.u32 %s1598, 4
          %s1609 = int_to_ptr.vmem [resolvable:$true] %s1608
          %1611 = dma.vmem_to_hbm [thread:$0]  %s1609, 128, %s1606, %s1595
        $region64: #{tpu_custom_call.1} parent=35 // pred_fallthru
          _
      $region36: #{tpu_custom_call.1} parent=5 // pred_fallthru
        _
      %p1612 = scmp.le.s32.totalorder 2, %s22
      // Predicated region
      $region65: #{tpu_custom_call.1} parent=5 // pred_check
        %p1613 = pneg %p1612
      $region66: #{tpu_custom_call.1} parent=5 // pred_check_branch
        %1615 = sbr.rel (%p1613) target = $region68
      $region67: #{tpu_custom_call.1} parent=5 // pred_region
        %s1616 = ssub.s32 %s22, 2
        // Predicated region
        $region69: #{tpu_custom_call.1} parent=67 // pred_check
          %p1617 = pneg %p164
        $region70: #{tpu_custom_call.1} parent=67 // pred_check_branch
          %1619 = sbr.rel (%p1617) target = $region72
        $region71: #{tpu_custom_call.1} parent=67 // pred_region
          %s1620 = sand.u32 %s149, 1
          %s1621 = scalar_lea.sflag [#allocation5], %s1620
          %s1622 = sand.u32 %s149, 1
          %s1623 = smul.addr %s1622, 8
          %s1624 = scalar_lea.vmem [#allocation11], %s1623
          %1625 = dma.done %s1621, 128
        $region72: #{tpu_custom_call.1} parent=67 // pred_fallthru
          _
      $region68: #{tpu_custom_call.1} parent=5 // pred_fallthru
        _
    $region6: #{tpu_custom_call.1} parent=1 // loop_footer
      %s26 = sadd.s32 1, %s22
    $region7: #{tpu_custom_call.1} parent=1 // loop_footer_branch
      %21 = sbr.rel target = $region3
    $region8: #{tpu_custom_call.1} parent=1 // loop_exit
      _
    %1626 = vsyncpa [#allocation4], 1
    %s1627 = scalar_lea.sflag [#allocation4], 1
    %1628 = vsyncpa %s1627, 1
    %1629 = vsyncpa [#allocation7], 1
    %s1630 = scalar_lea.sflag [#allocation7], 1
    %1631 = vsyncpa %s1630, 1
    %1632 = vsyncpa [#allocation10], 1
    %s1633 = scalar_lea.sflag [#allocation10], 1
    %1634 = vsyncpa %s1633, 1
    %1635 = vsyncpa [#allocation5], 1
    %s1636 = scalar_lea.sflag [#allocation5], 1
    %1637 = vsyncpa %s1636, 1

</llo_original>
